<compile_context>
chip_gen: v6e
topology: v6e:2x2x1
jax: 0.10.0
libtpu: 0.0.40
codegen_flags: <defaults>
</compile_context>

<pallas_src>
import functools
import math

import jax
import jax.numpy as jnp
from jax.experimental import pallas as pl
from jax.experimental.pallas import tpu as pltpu


def _cross_attn_layer_kernel(
    # row-flattened activations for this row block
    qf_ref, kf_ref, vf_ref,
    # per-head-group projection weights (group = leading dim, sliced by BlockSpec)
    wq_ref, bq_ref, wk_ref, bk_ref, wv_ref, bv_ref, wo_ref,
    # group-invariant weights
    bo_ref, wl_ref, bl_ref, gamma_ref, beta_ref, w1_ref, b1_ref, w2_ref, b2_ref,
    # output + scratch
    out_ref, acc_ref,
    *, heads_per_group, head_dim, batch_per_block, q_len, kv_len, eps,
):
    g = pl.program_id(1)            # head-group index (reduction axis, iterated fastest)
    ng = pl.num_programs(1)
    bf16, f32 = jnp.bfloat16, jnp.float32

    @pl.when(g == 0)
    def _init():
        acc_ref[...] = jnp.zeros_like(acc_ref)

    xq = qf_ref[...]                # (RBq, H) bf16
    xk = kf_ref[...]                # (RBk, H) bf16
    xv = vf_ref[...]

    # Grouped in-projections: full-lane (H x G*hd) MXU matmuls, f32 accumulation,
    # then a single bf16 cast per tensor (hoisted out of the per-head loop).
    q_g = (jnp.dot(xq, wq_ref[0], preferred_element_type=f32) + bq_ref[0]).astype(bf16)
    k_g = (jnp.dot(xk, wk_ref[0], preferred_element_type=f32) + bk_ref[0]).astype(bf16)
    v_g = (jnp.dot(xv, wv_ref[0], preferred_element_type=f32) + bv_ref[0]).astype(bf16)

    # Block-diagonal batch mask: query row r belongs to local batch r//Sq and may only
    # attend to key columns c with c//Sk equal to it.  One packed score matmul replaces
    # the old per-batch unroll; wasted FLOPs ~Bt x on the (small) attention part only.
    if batch_per_block > 1:
        rows_q = batch_per_block * q_len
        rows_k = batch_per_block * kv_len
        rb = jax.lax.broadcasted_iota(jnp.int32, (rows_q, rows_k), 0) // q_len
        cb = jax.lax.broadcasted_iota(jnp.int32, (rows_q, rows_k), 1) // kv_len
        batch_mask = rb == cb
    else:
        batch_mask = None

    # TODO(synk): for long kv sequences this should become an online-softmax over Sk
    # tiles (flash style) instead of materializing the full (RBq, RBk) f32 scores.
    ctx_parts = []
    for j in range(heads_per_group):            # small static unroll (G <= 8)
        sl = slice(j * head_dim, (j + 1) * head_dim)
        s = jnp.einsum("qd,kd->qk", q_g[:, sl], k_g[:, sl],
                       preferred_element_type=f32)                 # (RBq, RBk)
        if batch_mask is not None:
            s = jnp.where(batch_mask, s, -1e30)
        s = s - jnp.max(s, axis=-1, keepdims=True)
        p = jnp.exp(s)
        p = p * pl.reciprocal(jnp.sum(p, axis=-1, keepdims=True), approx=True)
        ctx_parts.append(jnp.dot(p.astype(bf16), v_g[:, sl],
                                 preferred_element_type=f32))       # (RBq, hd)

    ctx_g = ctx_parts[0] if len(ctx_parts) == 1 else jnp.concatenate(ctx_parts, axis=-1)
    # Group slice of the MHA out-projection: full-K (G*hd) matmul, accumulated per group.
    acc_ref[...] += jnp.dot(ctx_g.astype(bf16), wo_ref[0], preferred_element_type=f32)

    @pl.when(g == ng - 1)
    def _finalize():
        attn = acc_ref[...] + bo_ref[...]                           # (RBq, H) f32

        # CrossAttention.linear
        y = jnp.dot(attn.astype(bf16), wl_ref[...],
                    preferred_element_type=f32) + bl_ref[...]

        # LayerNorm over hidden (f32 math, biased variance like PyTorch).
        mean = jnp.mean(y, axis=-1, keepdims=True)
        var = jnp.mean(jnp.square(y - mean), axis=-1, keepdims=True)
        yn = (y - mean) * jax.lax.rsqrt(var + eps)
        yn = yn * gamma_ref[...] + beta_ref[...]

        # FFN: Linear -> ReLU -> Linear.  (Here F == H; for F = 4H configs on v7x this
        # should be tiled over F chunks to bound the (RBq, F) intermediate.)
        h1 = jnp.dot(yn.astype(bf16), w1_ref[...],
                     preferred_element_type=f32) + b1_ref[...]
        h1 = jnp.maximum(h1, 0.0)
        o = jnp.dot(h1.astype(bf16), w2_ref[...],
                    preferred_element_type=f32) + b2_ref[...]

        out_ref[...] = o.astype(out_ref.dtype)


def cross_attention_layer(q, k, v, params, *, num_heads,
                          rows_per_block=256, lane_group_target=128):
    """q: (B, Sq, H); k, v: (B, Sk, H). Returns (B, Sq, H)."""
    B, Sq, H = q.shape
    Bk, Sk, Hk = k.shape
    assert (Bk, Hk) == (B, H) and v.shape == k.shape
    assert H % num_heads == 0
    hd = H // num_heads

    (wq, wk, wv, bq, bk, bv, wo, bo, wl, bl, gamma, beta, w1, b1, w2, b2) = params
    F = w1.shape[0]                     # FFN hidden size (== H for this module)
    scale = 1.0 / math.sqrt(hd)
    f32, bf16 = jnp.float32, jnp.bfloat16

    # ---- head grouping: G heads per grid step so per-group weight slices are ~128
    # lanes wide (full MXU N/K) and the head grid axis shrinks by G.  The in-kernel
    # per-head unroll is capped at 8 to bound code size / vreg live ranges.
    G = max(1, min(num_heads, max(lane_group_target // max(hd, 1), 1), 8))
    while num_heads % G:
        G -= 1
    Gd = G * hd
    nG = num_heads // G

    # ---- host-side weight prep --------------------------------------------------
    # Fold 1/sqrt(hd) into Wq/bq, arrange head groups along a leading dim (BlockSpecs
    # do the slicing at DMA level), bf16 matmul operands, f32 biases.
    def group_in(w):                    # torch (H_out, H_in) -> (nG, H_in, G*hd)
        return jnp.asarray(w, f32).T.reshape(H, nG, Gd).transpose(1, 0, 2)

    wq_g = group_in(jnp.asarray(wq, f32) * scale).astype(bf16)
    wk_g = group_in(wk).astype(bf16)
    wv_g = group_in(wv).astype(bf16)
    bq_g = (jnp.asarray(bq, f32) * scale).reshape(nG, 1, Gd)
    bk_g = jnp.asarray(bk, f32).reshape(nG, 1, Gd)
    bv_g = jnp.asarray(bv, f32).reshape(nG, 1, Gd)
    wo_g = jnp.asarray(wo, f32).T.reshape(nG, Gd, H).astype(bf16)   # Wo^T row-groups

    bo_r = jnp.asarray(bo, f32).reshape(1, H)
    wlT = jnp.asarray(wl, f32).T.astype(bf16)
    bl_r = jnp.asarray(bl, f32).reshape(1, H)
    g_r = jnp.asarray(gamma, f32).reshape(1, H)
    be_r = jnp.asarray(beta, f32).reshape(1, H)
    w1T = jnp.asarray(w1, f32).T.astype(bf16)
    b1_r = jnp.asarray(b1, f32).reshape(1, F)
    w2T = jnp.asarray(w2, f32).T.astype(bf16)
    b2_r = jnp.asarray(b2, f32).reshape(1, H)

    # ---- row blocking: pack several batch elements per grid step so the H x H / H x F
    # matmuls see ~rows_per_block rows.  Cap Bt at B//2 so the "parallel" row axis has
    # at least 2 steps (v7x has 2 TensorCores per chip).
    Bt = max(1, min(B, rows_per_block // max(Sq, 1)))
    if B >= 2:
        Bt = min(Bt, max(1, B // 2))
    while Bt > 1 and (B % Bt or (Bt * Sq) % 8 or (Bt * Sk) % 8):
        Bt -= 1
    if (Bt * Sq) % 8 or (Bt * Sk) % 8 or B % Bt:
        Bt = B                          # full-extent fallback (block == whole array)
    RBq, RBk = Bt * Sq, Bt * Sk
    num_row_blocks = B // Bt
    # TODO(synk): for B == 1 with long Sq, split Sq across the parallel row axis
    # (per-block query rows + full K/V) so both v7x TensorCores get work.

    qf = q.reshape(B * Sq, H).astype(bf16)
    kf = k.reshape(B * Sk, H).astype(bf16)
    vf = v.reshape(B * Sk, H).astype(bf16)

    grid = (num_row_blocks, nG)         # (row blocks [parallel], head groups [reduction])

    row_q_spec = pl.BlockSpec((RBq, H), lambda i, g: (i, 0))
    row_kv_spec = pl.BlockSpec((RBk, H), lambda i, g: (i, 0))
    grp_in_spec = pl.BlockSpec((1, H, Gd), lambda i, g: (g, 0, 0))
    grp_bias_spec = pl.BlockSpec((1, 1, Gd), lambda i, g: (g, 0, 0))
    grp_out_spec = pl.BlockSpec((1, Gd, H), lambda i, g: (g, 0, 0))

    # Grid-invariant epilogue weights: single-buffer them when they are big enough for
    # the saved VMEM to matter (small blocks keep the default double buffer).
    invariant_bytes = (wlT.size + w1T.size + w2T.size) * 2 + (
        bo_r.size + bl_r.size + g_r.size + be_r.size + b1_r.size + b2_r.size) * 4
    single_buffer_invariants = invariant_bytes > (4 << 20)

    def invariant_spec(shape):
        imap = lambda i, g: (0, 0)
        if single_buffer_invariants:
            try:
                return pl.BlockSpec(shape, imap, pipeline_mode=pl.Buffered(1))
            except Exception:
                pass
        return pl.BlockSpec(shape, imap)

    # ---- VMEM budget: derived from the actual per-step footprint, clamped to 75% of
    # physical VMEM (64 MiB fallback == v7x per-TensorCore, the smallest current gen).
    out_itemsize = q.dtype.itemsize
    est = (
        2 * (RBq + 2 * RBk) * H * 2                           # q/k/v blocks, double-buffered bf16
        + 2 * RBq * H * out_itemsize                          # out block, double-buffered
        + 2 * ((3 * H * Gd + Gd * H) * 2 + 3 * Gd * 4)        # per-group weights, double-buffered
        + (1 if single_buffer_invariants else 2) * invariant_bytes
        + RBq * H * 4                                         # f32 accumulator scratch
        + RBq * RBk * 4 + (RBq + 2 * RBk) * Gd * 4            # scores + grouped q/k/v
        + RBq * (2 * H + F) * 4                               # epilogue intermediates
    )
    try:
        vmem_cap = pltpu.get_tpu_info().vmem_capacity_bytes
    except Exception:
        vmem_cap = 64 * 1024 * 1024
    vmem_budget = int(min(max(2 * est, 32 * 1024 * 1024), int(0.75 * vmem_cap)))

    kernel = functools.partial(
        _cross_attn_layer_kernel,
        heads_per_group=G, head_dim=hd, batch_per_block=Bt,
        q_len=Sq, kv_len=Sk, eps=1e-5,
    )

    out_flat = pl.pallas_call(
        kernel,
        out_shape=jax.ShapeDtypeStruct((B * Sq, H), q.dtype),
        grid_spec=pltpu.PrefetchScalarGridSpec(
            num_scalar_prefetch=0,
            grid=grid,
            in_specs=[
                row_q_spec, row_kv_spec, row_kv_spec,
                grp_in_spec, grp_bias_spec,      # wq, bq (scaled)
                grp_in_spec, grp_bias_spec,      # wk, bk
                grp_in_spec, grp_bias_spec,      # wv, bv
                grp_out_spec,                    # wo group rows of Wo^T
                invariant_spec((1, H)),          # bo
                invariant_spec((H, H)),          # wl^T
                invariant_spec((1, H)),          # bl
                invariant_spec((1, H)),          # gamma
                invariant_spec((1, H)),          # beta
                invariant_spec((H, F)),          # w1^T
                invariant_spec((1, F)),          # b1
                invariant_spec((F, H)),          # w2^T
                invariant_spec((1, H)),          # b2
            ],
            out_specs=pl.BlockSpec((RBq, H), lambda i, g: (i, 0)),
            scratch_shapes=[pltpu.VMEM((RBq, H), jnp.float32)],   # out-proj accumulator
        ),
        compiler_params=pltpu.CompilerParams(
            dimension_semantics=("parallel", "arbitrary"),
            vmem_limit_bytes=vmem_budget,
        ),
    )(qf, kf, vf,
      wq_g, bq_g, wk_g, bk_g, wv_g, bv_g, wo_g,
      bo_r, wlT, bl_r, g_r, be_r, w1T, b1_r, w2T, b2_r)

    return out_flat.reshape(B, Sq, H)


# ----------------------------------------------------------------------------------
# References for the correctness checks.
# ----------------------------------------------------------------------------------
def _reference_f32(q, k, v, params, *, num_heads, eps=1e-5):
    """Pure-f32 JAX reference mirroring the PyTorch module exactly."""
    (wq, wk, wv, bq, bk, bv, wo, bo, wl, bl, gamma, beta, w1, b1, w2, b2) = params
    B, Sq, H = q.shape
    hd = H // num_heads
    Q = q @ wq.T + bq
    K = k @ wk.T + bk
    V = v @ wv.T + bv

    def split(x):  # (B, S, H) -> (B, nh, S, hd)
        return x.reshape(B, -1, num_heads, hd).transpose(0, 2, 1, 3)

    Qh, Kh, Vh = split(Q), split(K), split(V)
    s = jnp.einsum("bhqd,bhkd->bhqk", Qh, Kh) / math.sqrt(hd)
    p = jax.nn.softmax(s, axis=-1)
    ctx = jnp.einsum("bhqk,bhkd->bhqd", p, Vh)
    ctx = ctx.transpose(0, 2, 1, 3).reshape(B, Sq, H)
    attn_out = ctx @ wo.T + bo
    y = attn_out @ wl.T + bl
    mean = jnp.mean(y, axis=-1, keepdims=True)
    var = jnp.mean((y - mean) ** 2, axis=-1, keepdims=True)
    yn = (y - mean) / jnp.sqrt(var + eps) * gamma + beta
    return jnp.maximum(yn @ w1.T + b1, 0.0) @ w2.T + b2


def _reference_bf16(q, k, v, params, *, num_heads, eps=1e-5):
    """Reference quantized at the same points as the kernel (bf16 matmul operands,
    f32 accumulation/softmax/LayerNorm), for a tighter comparison."""
    (wq, wk, wv, bq, bk, bv, wo, bo, wl, bl, gamma, beta, w1, b1, w2, b2) = params
    B, Sq, H = q.shape
    hd = H // num_heads
    sc = 1.0 / math.sqrt(hd)
    bf, f32 = jnp.bfloat16, jnp.float32

    def mm(a, w):
        return jnp.dot(a.astype(bf), w.astype(bf), preferred_element_type=f32)

    Q = mm(q, (wq * sc).T) + bq * sc
    K = mm(k, wk.T) + bk
    V = mm(v, wv.T) + bv

    def split(x):
        return x.reshape(B, -1, num_heads, hd).transpose(0, 2, 1, 3)

    Qh, Kh, Vh = split(Q), split(K), split(V)
    s = jnp.einsum("bhqd,bhkd->bhqk", Qh.astype(bf), Kh.astype(bf),
                   preferred_element_type=f32)
    s = s - s.max(-1, keepdims=True)
    p = jnp.exp(s)
    p = p / p.sum(-1, keepdims=True)
    ctx = jnp.einsum("bhqk,bhkd->bhqd", p.astype(bf), Vh.astype(bf),
                     preferred_element_type=f32)
    ctx = ctx.transpose(0, 2, 1, 3).reshape(B, Sq, H)
    attn = mm(ctx, wo.T) + bo
    y = mm(attn, wl.T) + bl
    mean = y.mean(-1, keepdims=True)
    var = ((y - mean) ** 2).mean(-1, keepdims=True)
    yn = (y - mean) * jax.lax.rsqrt(var + eps) * gamma + beta
    h1 = jnp.maximum(mm(yn, w1.T) + b1, 0.0)
    return mm(h1, w2.T) + b2


if __name__ == "__main__":
    base_key = jax.random.PRNGKey(0)

    def make_params(key, H, F):
        keys = jax.random.split(key, 13)

        def init_w(kk, shape, fan_in):
            bound = 1.0 / math.sqrt(fan_in)
            return jax.random.uniform(kk, shape, jnp.float32, -bound, bound)

        wq = init_w(keys[0], (H, H), H)
        wk = init_w(keys[1], (H, H), H)
        wv = init_w(keys[2], (H, H), H)
        bq = init_w(keys[3], (H,), H)
        bk = init_w(keys[4], (H,), H)
        bv = init_w(keys[5], (H,), H)
        wo = init_w(keys[6], (H, H), H)           # out_proj
        bo = jnp.zeros((H,), jnp.float32)         # out_proj bias (torch inits to 0)
        wl = init_w(keys[7], (H, H), H)           # CrossAttention.linear
        bl = init_w(keys[8], (H,), H)
        gamma = jnp.ones((H,), jnp.float32)       # LayerNorm weight
        beta = jnp.zeros((H,), jnp.float32)       # LayerNorm bias
        w1 = init_w(keys[9], (F, H), H)           # FFN linear1 (ffn_hidden == hidden)
        b1 = init_w(keys[10], (F,), H)
        w2 = init_w(keys[11], (H, F), F)          # FFN linear2
        b2 = init_w(keys[12], (H,), F)
        return (wq, wk, wv, bq, bk, bv, wo, bo, wl, bl, gamma, beta, w1, b1, w2, b2)

    def run_case(case_idx, B, Sq, Sk, H, nh):
        key = jax.random.fold_in(base_key, case_idx)
        kq, kk_, kv_, kp = jax.random.split(key, 4)
        q = jax.random.normal(kq, (B, Sq, H), jnp.float32)
        k = jax.random.normal(kk_, (B, Sk, H), jnp.float32)
        v = jax.random.normal(kv_, (B, Sk, H), jnp.float32)
        params = make_params(kp, H, H)

        out = jax.block_until_ready(
            cross_attention_layer(q, k, v, params, num_heads=nh))
        assert out.shape == (B, Sq, H)

        ref_bf = _reference_bf16(q, k, v, params, num_heads=nh)
        assert jnp.allclose(out, ref_bf, rtol=1e-2, atol=1e-2), \
            f"mismatch vs bf16-matched reference, case {(B, Sq, Sk, H, nh)}"

        ref_f32 = _reference_f32(q, k, v, params, num_heads=nh)
        assert jnp.allclose(out, ref_f32, rtol=5e-2, atol=5e-2), \
            f"mismatch vs f32 reference, case {(B, Sq, Sk, H, nh)}"

    # Small module-scale smoke test (single row block per batch element, one head group).
    run_case(0, B=2, Sq=8, Sk=8, H=32, nh=4)
    # Exercises the packed block-diagonal batch mask (Bt=2), multiple head groups (nG=2)
    # and the accumulate-over-groups path, with Sq != Sk.
    run_case(1, B=4, Sq=8, Sk=16, H=256, nh=16)

    print("KERNEL_OK")
</pallas_src>

<mosaic_0001>
module attributes {stable_mosaic.version = 11 : i64} {
  func.func @_cross_attn_layer_kernel(%arg0: i32, %arg1: i32, %arg2: memref<8x32xbf16, #tpu.memory_space<vmem>>, %arg3: memref<8x32xbf16, #tpu.memory_space<vmem>>, %arg4: memref<8x32xbf16, #tpu.memory_space<vmem>>, %arg5: memref<1x32x32xbf16, #tpu.memory_space<vmem>>, %arg6: memref<1x1x32xf32, #tpu.memory_space<vmem>>, %arg7: memref<1x32x32xbf16, #tpu.memory_space<vmem>>, %arg8: memref<1x1x32xf32, #tpu.memory_space<vmem>>, %arg9: memref<1x32x32xbf16, #tpu.memory_space<vmem>>, %arg10: memref<1x1x32xf32, #tpu.memory_space<vmem>>, %arg11: memref<1x32x32xbf16, #tpu.memory_space<vmem>>, %arg12: memref<1x32xf32, #tpu.memory_space<vmem>>, %arg13: memref<32x32xbf16, #tpu.memory_space<vmem>>, %arg14: memref<1x32xf32, #tpu.memory_space<vmem>>, %arg15: memref<1x32xf32, #tpu.memory_space<vmem>>, %arg16: memref<1x32xf32, #tpu.memory_space<vmem>>, %arg17: memref<32x32xbf16, #tpu.memory_space<vmem>>, %arg18: memref<1x32xf32, #tpu.memory_space<vmem>>, %arg19: memref<32x32xbf16, #tpu.memory_space<vmem>>, %arg20: memref<1x32xf32, #tpu.memory_space<vmem>>, %arg21: memref<8x32xf32, #tpu.memory_space<vmem>>, %arg22: memref<8x32xf32, #tpu.memory_space<vmem>>) attributes {dimension_semantics = [#tpu.dimension_semantics<parallel>, #tpu.dimension_semantics<arbitrary>], iteration_bounds = array<i64: 2, 1>, scalar_prefetch = 0 : i64, scratch_operands = 1 : i64, tpu.core_type = #tpu.core_type<tc>, window_params = [{transform_indices = @transform_0, window_bounds = array<i64: 8, 32>}, {transform_indices = @transform_1, window_bounds = array<i64: 8, 32>}, {transform_indices = @transform_2, window_bounds = array<i64: 8, 32>}, {transform_indices = @transform_3, window_bounds = array<i64: 1, 32, 32>}, {transform_indices = @transform_4, window_bounds = array<i64: 1, 1, 32>}, {transform_indices = @transform_5, window_bounds = array<i64: 1, 32, 32>}, {transform_indices = @transform_6, window_bounds = array<i64: 1, 1, 32>}, {transform_indices = @transform_7, window_bounds = array<i64: 1, 32, 32>}, {transform_indices = @transform_8, window_bounds = array<i64: 1, 1, 32>}, {transform_indices = @transform_9, window_bounds = array<i64: 1, 32, 32>}, {pipeline_mode = #tpu.pipeline_mode<synchronous>, transform_indices = @transform_10, window_bounds = array<i64: 1, 32>}, {pipeline_mode = #tpu.pipeline_mode<synchronous>, transform_indices = @transform_11, window_bounds = array<i64: 32, 32>}, {pipeline_mode = #tpu.pipeline_mode<synchronous>, transform_indices = @transform_12, window_bounds = array<i64: 1, 32>}, {pipeline_mode = #tpu.pipeline_mode<synchronous>, transform_indices = @transform_13, window_bounds = array<i64: 1, 32>}, {pipeline_mode = #tpu.pipeline_mode<synchronous>, transform_indices = @transform_14, window_bounds = array<i64: 1, 32>}, {pipeline_mode = #tpu.pipeline_mode<synchronous>, transform_indices = @transform_15, window_bounds = array<i64: 32, 32>}, {pipeline_mode = #tpu.pipeline_mode<synchronous>, transform_indices = @transform_16, window_bounds = array<i64: 1, 32>}, {pipeline_mode = #tpu.pipeline_mode<synchronous>, transform_indices = @transform_17, window_bounds = array<i64: 32, 32>}, {pipeline_mode = #tpu.pipeline_mode<synchronous>, transform_indices = @transform_18, window_bounds = array<i64: 1, 32>}, {transform_indices = @transform_19, window_bounds = array<i64: 8, 32>}]} {
    %c0_i32 = arith.constant 0 : i32
    %0 = arith.cmpi eq, %arg1, %c0_i32 : i32
    %1 = arith.extui %0 : i1 to i32
    %c0_i32_0 = arith.constant 0 : i32
    %2 = arith.cmpi ne, %1, %c0_i32_0 : i32
    scf.if %2 {
      %cst_52 = arith.constant 0.000000e+00 : f32
      %105 = vector.broadcast %cst_52 : f32 to vector<8x32xf32>
      %c0_53 = arith.constant 0 : index
      %c0_54 = arith.constant 0 : index
      %106 = vector.load %arg22[%c0_53, %c0_54] : memref<8x32xf32, #tpu.memory_space<vmem>>, vector<8x32xf32>
      tpu.vector_store %arg22[%c0_53, %c0_54], %105 {strides = array<i32>} : memref<8x32xf32, #tpu.memory_space<vmem>>, vector<8x32xf32>,
    } else {
    }
    %c0 = arith.constant 0 : index
    %c0_1 = arith.constant 0 : index
    %3 = vector.load %arg2[%c0, %c0_1] : memref<8x32xbf16, #tpu.memory_space<vmem>>, vector<8x32xbf16>
    %c0_2 = arith.constant 0 : index
    %c0_3 = arith.constant 0 : index
    %4 = vector.load %arg3[%c0_2, %c0_3] : memref<8x32xbf16, #tpu.memory_space<vmem>>, vector<8x32xbf16>
    %c0_4 = arith.constant 0 : index
    %c0_5 = arith.constant 0 : index
    %5 = vector.load %arg4[%c0_4, %c0_5] : memref<8x32xbf16, #tpu.memory_space<vmem>>, vector<8x32xbf16>
    %c0_6 = arith.constant 0 : index
    %c0_7 = arith.constant 0 : index
    %c0_8 = arith.constant 0 : index
    %6 = vector.load %arg5[%c0_6, %c0_7, %c0_8] : memref<1x32x32xbf16, #tpu.memory_space<vmem>>, vector<1x32x32xbf16>
    %7 = vector.shape_cast %6 : vector<1x32x32xbf16> to vector<32x32xbf16>
    %cst = arith.constant dense<0.000000e+00> : vector<8x32xf32>
    %8 = tpu.matmul %3, %7, %cst {dimension_numbers = #tpu.dot_dimension_numbers<[1], [0], [0], [1], [0, 0, 1, 1], [], []>} : vector<8x32xbf16>, vector<32x32xbf16>, vector<8x32xf32> -> vector<8x32xf32>
    %c0_9 = arith.constant 0 : index
    %c0_10 = arith.constant 0 : index
    %c0_11 = arith.constant 0 : index
    %9 = vector.load %arg6[%c0_9, %c0_10, %c0_11] : memref<1x1x32xf32, #tpu.memory_space<vmem>>, vector<1x1x32xf32>
    %10 = vector.shape_cast %9 : vector<1x1x32xf32> to vector<1x32xf32>
    %11 = vector.broadcast %10 : vector<1x32xf32> to vector<8x32xf32>
    %12 = arith.addf %8, %11 : vector<8x32xf32>
    %13 = arith.truncf %12 : vector<8x32xf32> to vector<8x32xbf16>
    %c0_12 = arith.constant 0 : index
    %c0_13 = arith.constant 0 : index
    %c0_14 = arith.constant 0 : index
    %14 = vector.load %arg7[%c0_12, %c0_13, %c0_14] : memref<1x32x32xbf16, #tpu.memory_space<vmem>>, vector<1x32x32xbf16>
    %15 = vector.shape_cast %14 : vector<1x32x32xbf16> to vector<32x32xbf16>
    %cst_15 = arith.constant dense<0.000000e+00> : vector<8x32xf32>
    %16 = tpu.matmul %4, %15, %cst_15 {dimension_numbers = #tpu.dot_dimension_numbers<[1], [0], [0], [1], [0, 0, 1, 1], [], []>} : vector<8x32xbf16>, vector<32x32xbf16>, vector<8x32xf32> -> vector<8x32xf32>
    %c0_16 = arith.constant 0 : index
    %c0_17 = arith.constant 0 : index
    %c0_18 = arith.constant 0 : index
    %17 = vector.load %arg8[%c0_16, %c0_17, %c0_18] : memref<1x1x32xf32, #tpu.memory_space<vmem>>, vector<1x1x32xf32>
    %18 = vector.shape_cast %17 : vector<1x1x32xf32> to vector<1x32xf32>
    %19 = vector.broadcast %18 : vector<1x32xf32> to vector<8x32xf32>
    %20 = arith.addf %16, %19 : vector<8x32xf32>
    %21 = arith.truncf %20 : vector<8x32xf32> to vector<8x32xbf16>
    %c0_19 = arith.constant 0 : index
    %c0_20 = arith.constant 0 : index
    %c0_21 = arith.constant 0 : index
    %22 = vector.load %arg9[%c0_19, %c0_20, %c0_21] : memref<1x32x32xbf16, #tpu.memory_space<vmem>>, vector<1x32x32xbf16>
    %23 = vector.shape_cast %22 : vector<1x32x32xbf16> to vector<32x32xbf16>
    %cst_22 = arith.constant dense<0.000000e+00> : vector<8x32xf32>
    %24 = tpu.matmul %5, %23, %cst_22 {dimension_numbers = #tpu.dot_dimension_numbers<[1], [0], [0], [1], [0, 0, 1, 1], [], []>} : vector<8x32xbf16>, vector<32x32xbf16>, vector<8x32xf32> -> vector<8x32xf32>
    %c0_23 = arith.constant 0 : index
    %c0_24 = arith.constant 0 : index
    %c0_25 = arith.constant 0 : index
    %25 = vector.load %arg10[%c0_23, %c0_24, %c0_25] : memref<1x1x32xf32, #tpu.memory_space<vmem>>, vector<1x1x32xf32>
    %26 = vector.shape_cast %25 : vector<1x1x32xf32> to vector<1x32xf32>
    %27 = vector.broadcast %26 : vector<1x32xf32> to vector<8x32xf32>
    %28 = arith.addf %24, %27 : vector<8x32xf32>
    %29 = arith.truncf %28 : vector<8x32xf32> to vector<8x32xbf16>
    %30 = vector.extract_strided_slice %13 {offsets = [0, 0], sizes = [8, 8], strides = [1, 1]} : vector<8x32xbf16> to vector<8x8xbf16>
    %31 = vector.extract_strided_slice %21 {offsets = [0, 0], sizes = [8, 8], strides = [1, 1]} : vector<8x32xbf16> to vector<8x8xbf16>
    "tpu.trace_start"() <{level = 10 : i32, message = "qd,kd->qk"}> : () -> ()
    %cst_26 = arith.constant dense<0.000000e+00> : vector<8x8xf32>
    %32 = tpu.matmul %30, %31, %cst_26 {dimension_numbers = #tpu.dot_dimension_numbers<[1], [1], [0], [0], [0, 0, 1, 0], [], []>} : vector<8x8xbf16>, vector<8x8xbf16>, vector<8x8xf32> -> vector<8x8xf32>
    "tpu.trace_stop"() : () -> ()
    %cst_27 = arith.constant dense<0xFF800000> : vector<8xf32>
    %33 = vector.multi_reduction <maximumf>, %32, %cst_27 [1] : vector<8x8xf32> to vector<8xf32>
    %34 = vector.shape_cast %33 : vector<8xf32> to vector<8x1xf32>
    %35 = vector.broadcast %34 : vector<8x1xf32> to vector<8x8xf32>
    %36 = arith.subf %32, %35 : vector<8x8xf32>
    %37 = math.exp %36 : vector<8x8xf32>
    %cst_28 = arith.constant dense<0.000000e+00> : vector<8xf32>
    %38 = vector.multi_reduction <add>, %37, %cst_28 [1] : vector<8x8xf32> to vector<8xf32>
    %39 = vector.shape_cast %38 : vector<8xf32> to vector<8x1xf32>
    %40 = tpu.reciprocal %39 {approx = true} : vector<8x1xf32> -> vector<8x1xf32>
    %41 = vector.broadcast %40 : vector<8x1xf32> to vector<8x8xf32>
    %42 = arith.mulf %37, %41 : vector<8x8xf32>
    %43 = arith.truncf %42 : vector<8x8xf32> to vector<8x8xbf16>
    %44 = vector.extract_strided_slice %29 {offsets = [0, 0], sizes = [8, 8], strides = [1, 1]} : vector<8x32xbf16> to vector<8x8xbf16>
    %cst_29 = arith.constant dense<0.000000e+00> : vector<8x8xf32>
    %45 = tpu.matmul %43, %44, %cst_29 {dimension_numbers = #tpu.dot_dimension_numbers<[1], [0], [0], [1], [0, 0, 1, 1], [], []>} : vector<8x8xbf16>, vector<8x8xbf16>, vector<8x8xf32> -> vector<8x8xf32>
    %46 = vector.extract_strided_slice %13 {offsets = [0, 8], sizes = [8, 8], strides = [1, 1]} : vector<8x32xbf16> to vector<8x8xbf16>
    %47 = vector.extract_strided_slice %21 {offsets = [0, 8], sizes = [8, 8], strides = [1, 1]} : vector<8x32xbf16> to vector<8x8xbf16>
    "tpu.trace_start"() <{level = 10 : i32, message = "qd,kd->qk"}> : () -> ()
    %cst_30 = arith.constant dense<0.000000e+00> : vector<8x8xf32>
    %48 = tpu.matmul %46, %47, %cst_30 {dimension_numbers = #tpu.dot_dimension_numbers<[1], [1], [0], [0], [0, 0, 1, 0], [], []>} : vector<8x8xbf16>, vector<8x8xbf16>, vector<8x8xf32> -> vector<8x8xf32>
    "tpu.trace_stop"() : () -> ()
    %cst_31 = arith.constant dense<0xFF800000> : vector<8xf32>
    %49 = vector.multi_reduction <maximumf>, %48, %cst_31 [1] : vector<8x8xf32> to vector<8xf32>
    %50 = vector.shape_cast %49 : vector<8xf32> to vector<8x1xf32>
    %51 = vector.broadcast %50 : vector<8x1xf32> to vector<8x8xf32>
    %52 = arith.subf %48, %51 : vector<8x8xf32>
    %53 = math.exp %52 : vector<8x8xf32>
    %cst_32 = arith.constant dense<0.000000e+00> : vector<8xf32>
    %54 = vector.multi_reduction <add>, %53, %cst_32 [1] : vector<8x8xf32> to vector<8xf32>
    %55 = vector.shape_cast %54 : vector<8xf32> to vector<8x1xf32>
    %56 = tpu.reciprocal %55 {approx = true} : vector<8x1xf32> -> vector<8x1xf32>
    %57 = vector.broadcast %56 : vector<8x1xf32> to vector<8x8xf32>
    %58 = arith.mulf %53, %57 : vector<8x8xf32>
    %59 = arith.truncf %58 : vector<8x8xf32> to vector<8x8xbf16>
    %60 = vector.extract_strided_slice %29 {offsets = [0, 8], sizes = [8, 8], strides = [1, 1]} : vector<8x32xbf16> to vector<8x8xbf16>
    %cst_33 = arith.constant dense<0.000000e+00> : vector<8x8xf32>
    %61 = tpu.matmul %59, %60, %cst_33 {dimension_numbers = #tpu.dot_dimension_numbers<[1], [0], [0], [1], [0, 0, 1, 1], [], []>} : vector<8x8xbf16>, vector<8x8xbf16>, vector<8x8xf32> -> vector<8x8xf32>
    %62 = vector.extract_strided_slice %13 {offsets = [0, 16], sizes = [8, 8], strides = [1, 1]} : vector<8x32xbf16> to vector<8x8xbf16>
    %63 = vector.extract_strided_slice %21 {offsets = [0, 16], sizes = [8, 8], strides = [1, 1]} : vector<8x32xbf16> to vector<8x8xbf16>
    "tpu.trace_start"() <{level = 10 : i32, message = "qd,kd->qk"}> : () -> ()
    %cst_34 = arith.constant dense<0.000000e+00> : vector<8x8xf32>
    %64 = tpu.matmul %62, %63, %cst_34 {dimension_numbers = #tpu.dot_dimension_numbers<[1], [1], [0], [0], [0, 0, 1, 0], [], []>} : vector<8x8xbf16>, vector<8x8xbf16>, vector<8x8xf32> -> vector<8x8xf32>
    "tpu.trace_stop"() : () -> ()
    %cst_35 = arith.constant dense<0xFF800000> : vector<8xf32>
    %65 = vector.multi_reduction <maximumf>, %64, %cst_35 [1] : vector<8x8xf32> to vector<8xf32>
    %66 = vector.shape_cast %65 : vector<8xf32> to vector<8x1xf32>
    %67 = vector.broadcast %66 : vector<8x1xf32> to vector<8x8xf32>
    %68 = arith.subf %64, %67 : vector<8x8xf32>
    %69 = math.exp %68 : vector<8x8xf32>
    %cst_36 = arith.constant dense<0.000000e+00> : vector<8xf32>
    %70 = vector.multi_reduction <add>, %69, %cst_36 [1] : vector<8x8xf32> to vector<8xf32>
    %71 = vector.shape_cast %70 : vector<8xf32> to vector<8x1xf32>
    %72 = tpu.reciprocal %71 {approx = true} : vector<8x1xf32> -> vector<8x1xf32>
    %73 = vector.broadcast %72 : vector<8x1xf32> to vector<8x8xf32>
    %74 = arith.mulf %69, %73 : vector<8x8xf32>
    %75 = arith.truncf %74 : vector<8x8xf32> to vector<8x8xbf16>
    %76 = vector.extract_strided_slice %29 {offsets = [0, 16], sizes = [8, 8], strides = [1, 1]} : vector<8x32xbf16> to vector<8x8xbf16>
    %cst_37 = arith.constant dense<0.000000e+00> : vector<8x8xf32>
    %77 = tpu.matmul %75, %76, %cst_37 {dimension_numbers = #tpu.dot_dimension_numbers<[1], [0], [0], [1], [0, 0, 1, 1], [], []>} : vector<8x8xbf16>, vector<8x8xbf16>, vector<8x8xf32> -> vector<8x8xf32>
    %78 = vector.extract_strided_slice %13 {offsets = [0, 24], sizes = [8, 8], strides = [1, 1]} : vector<8x32xbf16> to vector<8x8xbf16>
    %79 = vector.extract_strided_slice %21 {offsets = [0, 24], sizes = [8, 8], strides = [1, 1]} : vector<8x32xbf16> to vector<8x8xbf16>
    "tpu.trace_start"() <{level = 10 : i32, message = "qd,kd->qk"}> : () -> ()
    %cst_38 = arith.constant dense<0.000000e+00> : vector<8x8xf32>
    %80 = tpu.matmul %78, %79, %cst_38 {dimension_numbers = #tpu.dot_dimension_numbers<[1], [1], [0], [0], [0, 0, 1, 0], [], []>} : vector<8x8xbf16>, vector<8x8xbf16>, vector<8x8xf32> -> vector<8x8xf32>
    "tpu.trace_stop"() : () -> ()
    %cst_39 = arith.constant dense<0xFF800000> : vector<8xf32>
    %81 = vector.multi_reduction <maximumf>, %80, %cst_39 [1] : vector<8x8xf32> to vector<8xf32>
    %82 = vector.shape_cast %81 : vector<8xf32> to vector<8x1xf32>
    %83 = vector.broadcast %82 : vector<8x1xf32> to vector<8x8xf32>
    %84 = arith.subf %80, %83 : vector<8x8xf32>
    %85 = math.exp %84 : vector<8x8xf32>
    %cst_40 = arith.constant dense<0.000000e+00> : vector<8xf32>
    %86 = vector.multi_reduction <add>, %85, %cst_40 [1] : vector<8x8xf32> to vector<8xf32>
    %87 = vector.shape_cast %86 : vector<8xf32> to vector<8x1xf32>
    %88 = tpu.reciprocal %87 {approx = true} : vector<8x1xf32> -> vector<8x1xf32>
    %89 = vector.broadcast %88 : vector<8x1xf32> to vector<8x8xf32>
    %90 = arith.mulf %85, %89 : vector<8x8xf32>
    %91 = arith.truncf %90 : vector<8x8xf32> to vector<8x8xbf16>
    %92 = vector.extract_strided_slice %29 {offsets = [0, 24], sizes = [8, 8], strides = [1, 1]} : vector<8x32xbf16> to vector<8x8xbf16>
    %cst_41 = arith.constant dense<0.000000e+00> : vector<8x8xf32>
    %93 = tpu.matmul %91, %92, %cst_41 {dimension_numbers = #tpu.dot_dimension_numbers<[1], [0], [0], [1], [0, 0, 1, 1], [], []>} : vector<8x8xbf16>, vector<8x8xbf16>, vector<8x8xf32> -> vector<8x8xf32>
    %94 = tpu.concatenate %45, %61, %77, %93 in 1 : vector<8x8xf32>, vector<8x8xf32>, vector<8x8xf32>, vector<8x8xf32> -> vector<8x32xf32>
    %c0_42 = arith.constant 0 : index
    %c0_43 = arith.constant 0 : index
    %95 = vector.load %arg22[%c0_42, %c0_43] : memref<8x32xf32, #tpu.memory_space<vmem>>, vector<8x32xf32>
    %96 = arith.truncf %94 : vector<8x32xf32> to vector<8x32xbf16>
    %c0_44 = arith.constant 0 : index
    %c0_45 = arith.constant 0 : index
    %c0_46 = arith.constant 0 : index
    %97 = vector.load %arg11[%c0_44, %c0_45, %c0_46] : memref<1x32x32xbf16, #tpu.memory_space<vmem>>, vector<1x32x32xbf16>
    %98 = vector.shape_cast %97 : vector<1x32x32xbf16> to vector<32x32xbf16>
    %cst_47 = arith.constant dense<0.000000e+00> : vector<8x32xf32>
    %99 = tpu.matmul %96, %98, %cst_47 {dimension_numbers = #tpu.dot_dimension_numbers<[1], [0], [0], [1], [0, 0, 1, 1], [], []>} : vector<8x32xbf16>, vector<32x32xbf16>, vector<8x32xf32> -> vector<8x32xf32>
    %100 = arith.addf %95, %99 : vector<8x32xf32>
    %c0_48 = arith.constant 0 : index
    %c0_49 = arith.constant 0 : index
    %101 = vector.load %arg22[%c0_48, %c0_49] : memref<8x32xf32, #tpu.memory_space<vmem>>, vector<8x32xf32>
    tpu.vector_store %arg22[%c0_48, %c0_49], %100 {strides = array<i32>} : memref<8x32xf32, #tpu.memory_space<vmem>>, vector<8x32xf32>,
    %c0_i32_50 = arith.constant 0 : i32
    %102 = arith.cmpi eq, %arg1, %c0_i32_50 : i32
    %103 = arith.extui %102 : i1 to i32
    %c0_i32_51 = arith.constant 0 : i32
    %104 = arith.cmpi ne, %103, %c0_i32_51 : i32
    scf.if %104 {
      %c0_52 = arith.constant 0 : index
      %c0_53 = arith.constant 0 : index
      %105 = vector.load %arg22[%c0_52, %c0_53] : memref<8x32xf32, #tpu.memory_space<vmem>>, vector<8x32xf32>
      %c0_54 = arith.constant 0 : index
      %c0_55 = arith.constant 0 : index
      %106 = vector.load %arg12[%c0_54, %c0_55] : memref<1x32xf32, #tpu.memory_space<vmem>>, vector<1x32xf32>
      %107 = vector.broadcast %106 : vector<1x32xf32> to vector<8x32xf32>
      %108 = arith.addf %105, %107 : vector<8x32xf32>
      %109 = arith.truncf %108 : vector<8x32xf32> to vector<8x32xbf16>
      %c0_56 = arith.constant 0 : index
      %c0_57 = arith.constant 0 : index
      %110 = vector.load %arg13[%c0_56, %c0_57] : memref<32x32xbf16, #tpu.memory_space<vmem>>, vector<32x32xbf16>
      %cst_58 = arith.constant dense<0.000000e+00> : vector<8x32xf32>
      %111 = tpu.matmul %109, %110, %cst_58 {dimension_numbers = #tpu.dot_dimension_numbers<[1], [0], [0], [1], [0, 0, 1, 1], [], []>} : vector<8x32xbf16>, vector<32x32xbf16>, vector<8x32xf32> -> vector<8x32xf32>
      %c0_59 = arith.constant 0 : index
      %c0_60 = arith.constant 0 : index
      %112 = vector.load %arg14[%c0_59, %c0_60] : memref<1x32xf32, #tpu.memory_space<vmem>>, vector<1x32xf32>
      %113 = vector.broadcast %112 : vector<1x32xf32> to vector<8x32xf32>
      %114 = arith.addf %111, %113 : vector<8x32xf32>
      %cst_61 = arith.constant dense<0.000000e+00> : vector<8xf32>
      %115 = vector.multi_reduction <add>, %114, %cst_61 [1] : vector<8x32xf32> to vector<8xf32>
      %116 = vector.shape_cast %115 : vector<8xf32> to vector<8x1xf32>
      %cst_62 = arith.constant 3.200000e+01 : f32
      %117 = vector.broadcast %cst_62 : f32 to vector<8x1xf32>
      %118 = arith.divf %116, %117 : vector<8x1xf32>
      %119 = vector.broadcast %118 : vector<8x1xf32> to vector<8x32xf32>
      %120 = arith.subf %114, %119 : vector<8x32xf32>
      %121 = arith.mulf %120, %120 : vector<8x32xf32>
      %cst_63 = arith.constant dense<0.000000e+00> : vector<8xf32>
      %122 = vector.multi_reduction <add>, %121, %cst_63 [1] : vector<8x32xf32> to vector<8xf32>
      %123 = vector.shape_cast %122 : vector<8xf32> to vector<8x1xf32>
      %cst_64 = arith.constant 3.200000e+01 : f32
      %124 = vector.broadcast %cst_64 : f32 to vector<8x1xf32>
      %125 = arith.divf %123, %124 : vector<8x1xf32>
      %126 = vector.broadcast %118 : vector<8x1xf32> to vector<8x32xf32>
      %127 = arith.subf %114, %126 : vector<8x32xf32>
      %cst_65 = arith.constant 9.99999974E-6 : f32
      %128 = vector.broadcast %cst_65 : f32 to vector<8x1xf32>
      %129 = arith.addf %125, %128 : vector<8x1xf32>
      %130 = math.rsqrt %129 : vector<8x1xf32>
      %131 = vector.broadcast %130 : vector<8x1xf32> to vector<8x32xf32>
      %132 = arith.mulf %127, %131 : vector<8x32xf32>
      %c0_66 = arith.constant 0 : index
      %c0_67 = arith.constant 0 : index
      %133 = vector.load %arg15[%c0_66, %c0_67] : memref<1x32xf32, #tpu.memory_space<vmem>>, vector<1x32xf32>
      %134 = vector.broadcast %133 : vector<1x32xf32> to vector<8x32xf32>
      %135 = arith.mulf %132, %134 : vector<8x32xf32>
      %c0_68 = arith.constant 0 : index
      %c0_69 = arith.constant 0 : index
      %136 = vector.load %arg16[%c0_68, %c0_69] : memref<1x32xf32, #tpu.memory_space<vmem>>, vector<1x32xf32>
      %137 = vector.broadcast %136 : vector<1x32xf32> to vector<8x32xf32>
      %138 = arith.addf %135, %137 : vector<8x32xf32>
      %139 = arith.truncf %138 : vector<8x32xf32> to vector<8x32xbf16>
      %c0_70 = arith.constant 0 : index
      %c0_71 = arith.constant 0 : index
      %140 = vector.load %arg17[%c0_70, %c0_71] : memref<32x32xbf16, #tpu.memory_space<vmem>>, vector<32x32xbf16>
      %cst_72 = arith.constant dense<0.000000e+00> : vector<8x32xf32>
      %141 = tpu.matmul %139, %140, %cst_72 {dimension_numbers = #tpu.dot_dimension_numbers<[1], [0], [0], [1], [0, 0, 1, 1], [], []>} : vector<8x32xbf16>, vector<32x32xbf16>, vector<8x32xf32> -> vector<8x32xf32>
      %c0_73 = arith.constant 0 : index
      %c0_74 = arith.constant 0 : index
      %142 = vector.load %arg18[%c0_73, %c0_74] : memref<1x32xf32, #tpu.memory_space<vmem>>, vector<1x32xf32>
      %143 = vector.broadcast %142 : vector<1x32xf32> to vector<8x32xf32>
      %144 = arith.addf %141, %143 : vector<8x32xf32>
      %cst_75 = arith.constant 0.000000e+00 : f32
      %145 = vector.broadcast %cst_75 : f32 to vector<8x32xf32>
      %146 = arith.maximumf %144, %145 : vector<8x32xf32>
      %147 = arith.truncf %146 : vector<8x32xf32> to vector<8x32xbf16>
      %c0_76 = arith.constant 0 : index
      %c0_77 = arith.constant 0 : index
      %148 = vector.load %arg19[%c0_76, %c0_77] : memref<32x32xbf16, #tpu.memory_space<vmem>>, vector<32x32xbf16>
      %cst_78 = arith.constant dense<0.000000e+00> : vector<8x32xf32>
      %149 = tpu.matmul %147, %148, %cst_78 {dimension_numbers = #tpu.dot_dimension_numbers<[1], [0], [0], [1], [0, 0, 1, 1], [], []>} : vector<8x32xbf16>, vector<32x32xbf16>, vector<8x32xf32> -> vector<8x32xf32>
      %c0_79 = arith.constant 0 : index
      %c0_80 = arith.constant 0 : index
      %150 = vector.load %arg20[%c0_79, %c0_80] : memref<1x32xf32, #tpu.memory_space<vmem>>, vector<1x32xf32>
      %151 = vector.broadcast %150 : vector<1x32xf32> to vector<8x32xf32>
      %152 = arith.addf %149, %151 : vector<8x32xf32>
      %c0_81 = arith.constant 0 : index
      %c0_82 = arith.constant 0 : index
      %153 = vector.load %arg21[%c0_81, %c0_82] : memref<8x32xf32, #tpu.memory_space<vmem>>, vector<8x32xf32>
      tpu.vector_store %arg21[%c0_81, %c0_82], %152 {strides = array<i32>} : memref<8x32xf32, #tpu.memory_space<vmem>>, vector<8x32xf32>,
    } else {
    }
    return
  }
  func.func @transform_0(%arg0: i32, %arg1: i32) -> (i32, i32) {
    %c0_i32 = arith.constant 0 : i32
    %c0_i32_0 = arith.constant 0 : i32
    return %arg0, %c0_i32 : i32, i32
  }
  func.func @transform_1(%arg0: i32, %arg1: i32) -> (i32, i32) {
    %c0_i32 = arith.constant 0 : i32
    %c0_i32_0 = arith.constant 0 : i32
    return %arg0, %c0_i32 : i32, i32
  }
  func.func @transform_2(%arg0: i32, %arg1: i32) -> (i32, i32) {
    %c0_i32 = arith.constant 0 : i32
    %c0_i32_0 = arith.constant 0 : i32
    return %arg0, %c0_i32 : i32, i32
  }
  func.func @transform_3(%arg0: i32, %arg1: i32) -> (i32, i32, i32) {
    %c0_i32 = arith.constant 0 : i32
    %c0_i32_0 = arith.constant 0 : i32
    %c0_i32_1 = arith.constant 0 : i32
    return %arg1, %c0_i32, %c0_i32_0 : i32, i32, i32
  }
  func.func @transform_4(%arg0: i32, %arg1: i32) -> (i32, i32, i32) {
    %c0_i32 = arith.constant 0 : i32
    %c0_i32_0 = arith.constant 0 : i32
    %c0_i32_1 = arith.constant 0 : i32
    return %arg1, %c0_i32, %c0_i32_0 : i32, i32, i32
  }
  func.func @transform_5(%arg0: i32, %arg1: i32) -> (i32, i32, i32) {
    %c0_i32 = arith.constant 0 : i32
    %c0_i32_0 = arith.constant 0 : i32
    %c0_i32_1 = arith.constant 0 : i32
    return %arg1, %c0_i32, %c0_i32_0 : i32, i32, i32
  }
  func.func @transform_6(%arg0: i32, %arg1: i32) -> (i32, i32, i32) {
    %c0_i32 = arith.constant 0 : i32
    %c0_i32_0 = arith.constant 0 : i32
    %c0_i32_1 = arith.constant 0 : i32
    return %arg1, %c0_i32, %c0_i32_0 : i32, i32, i32
  }
  func.func @transform_7(%arg0: i32, %arg1: i32) -> (i32, i32, i32) {
    %c0_i32 = arith.constant 0 : i32
    %c0_i32_0 = arith.constant 0 : i32
    %c0_i32_1 = arith.constant 0 : i32
    return %arg1, %c0_i32, %c0_i32_0 : i32, i32, i32
  }
  func.func @transform_8(%arg0: i32, %arg1: i32) -> (i32, i32, i32) {
    %c0_i32 = arith.constant 0 : i32
    %c0_i32_0 = arith.constant 0 : i32
    %c0_i32_1 = arith.constant 0 : i32
    return %arg1, %c0_i32, %c0_i32_0 : i32, i32, i32
  }
  func.func @transform_9(%arg0: i32, %arg1: i32) -> (i32, i32, i32) {
    %c0_i32 = arith.constant 0 : i32
    %c0_i32_0 = arith.constant 0 : i32
    %c0_i32_1 = arith.constant 0 : i32
    return %arg1, %c0_i32, %c0_i32_0 : i32, i32, i32
  }
  func.func @transform_10(%arg0: i32, %arg1: i32) -> (i32, i32) {
    %c0_i32 = arith.constant 0 : i32
    %c0_i32_0 = arith.constant 0 : i32
    %c0_i32_1 = arith.constant 0 : i32
    return %c0_i32, %c0_i32_0 : i32, i32
  }
  func.func @transform_11(%arg0: i32, %arg1: i32) -> (i32, i32) {
    %c0_i32 = arith.constant 0 : i32
    %c0_i32_0 = arith.constant 0 : i32
    %c0_i32_1 = arith.constant 0 : i32
    return %c0_i32, %c0_i32_0 : i32, i32
  }
  func.func @transform_12(%arg0: i32, %arg1: i32) -> (i32, i32) {
    %c0_i32 = arith.constant 0 : i32
    %c0_i32_0 = arith.constant 0 : i32
    %c0_i32_1 = arith.constant 0 : i32
    return %c0_i32, %c0_i32_0 : i32, i32
  }
  func.func @transform_13(%arg0: i32, %arg1: i32) -> (i32, i32) {
    %c0_i32 = arith.constant 0 : i32
    %c0_i32_0 = arith.constant 0 : i32
    %c0_i32_1 = arith.constant 0 : i32
    return %c0_i32, %c0_i32_0 : i32, i32
  }
  func.func @transform_14(%arg0: i32, %arg1: i32) -> (i32, i32) {
    %c0_i32 = arith.constant 0 : i32
    %c0_i32_0 = arith.constant 0 : i32
    %c0_i32_1 = arith.constant 0 : i32
    return %c0_i32, %c0_i32_0 : i32, i32
  }
  func.func @transform_15(%arg0: i32, %arg1: i32) -> (i32, i32) {
    %c0_i32 = arith.constant 0 : i32
    %c0_i32_0 = arith.constant 0 : i32
    %c0_i32_1 = arith.constant 0 : i32
    return %c0_i32, %c0_i32_0 : i32, i32
  }
  func.func @transform_16(%arg0: i32, %arg1: i32) -> (i32, i32) {
    %c0_i32 = arith.constant 0 : i32
    %c0_i32_0 = arith.constant 0 : i32
    %c0_i32_1 = arith.constant 0 : i32
    return %c0_i32, %c0_i32_0 : i32, i32
  }
  func.func @transform_17(%arg0: i32, %arg1: i32) -> (i32, i32) {
    %c0_i32 = arith.constant 0 : i32
    %c0_i32_0 = arith.constant 0 : i32
    %c0_i32_1 = arith.constant 0 : i32
    return %c0_i32, %c0_i32_0 : i32, i32
  }
  func.func @transform_18(%arg0: i32, %arg1: i32) -> (i32, i32) {
    %c0_i32 = arith.constant 0 : i32
    %c0_i32_0 = arith.constant 0 : i32
    %c0_i32_1 = arith.constant 0 : i32
    return %c0_i32, %c0_i32_0 : i32, i32
  }
  func.func @transform_19(%arg0: i32, %arg1: i32) -> (i32, i32) {
    %c0_i32 = arith.constant 0 : i32
    %c0_i32_0 = arith.constant 0 : i32
    return %arg0, %c0_i32 : i32, i32
  }
}

</mosaic_0001>

<llo_original>
// kernel: tpu_custom_call.1
$region0: #{tpu_custom_call.1}
  #allocation0 [shape = 'u32[]', space=smem, size = 0x4, offset = 0x4, fixed_abs, tag = 'smem constant byte address 0x4 - core index']
  #allocation1 [shape = 'u32[144,128]{1,0:T(1,128)}', space=vmem, size = 0x12000, scoped, tag = 'internal scratch']
  #allocation2 [shape = 'f32[8,32]{1,0:T(8,128)}', space=vmem, size = 0x1000, scoped, tag = 'scratch operand']
  %s0 = inlined_call_operand.hbm [shape: bf16[16,32], index: 0, kind: input, shape index: {}]
  %s1 = inlined_call_operand.hbm [shape: bf16[16,32], index: 1, kind: input, shape index: {}]
  %s2 = inlined_call_operand.hbm [shape: bf16[16,32], index: 2, kind: input, shape index: {}]
  %s3 = inlined_call_operand.hbm [shape: bf16[1,32,32], index: 3, kind: input, shape index: {}]
  %s4 = inlined_call_operand.hbm [shape: f32[1,1,32], index: 4, kind: input, shape index: {}]
  %s5 = inlined_call_operand.hbm [shape: bf16[1,32,32], index: 5, kind: input, shape index: {}]
  %s6 = inlined_call_operand.hbm [shape: f32[1,1,32], index: 6, kind: input, shape index: {}]
  %s7 = inlined_call_operand.hbm [shape: bf16[1,32,32], index: 7, kind: input, shape index: {}]
  %s8 = inlined_call_operand.hbm [shape: f32[1,1,32], index: 8, kind: input, shape index: {}]
  %s9 = inlined_call_operand.vmem [shape: bf16[1,32,32], index: 9, kind: input, shape index: {}]
  %s10 = inlined_call_operand.vmem [shape: f32[1,32], index: 10, kind: input, shape index: {}]
  %s11 = inlined_call_operand.hbm [shape: bf16[32,32], index: 11, kind: input, shape index: {}]
  %s12 = inlined_call_operand.vmem [shape: f32[1,32], index: 12, kind: input, shape index: {}]
  %s13 = inlined_call_operand.vmem [shape: f32[1,32], index: 13, kind: input, shape index: {}]
  %s14 = inlined_call_operand.vmem [shape: f32[1,32], index: 14, kind: input, shape index: {}]
  %s15 = inlined_call_operand.hbm [shape: bf16[32,32], index: 15, kind: input, shape index: {}]
  %s16 = inlined_call_operand.vmem [shape: f32[1,32], index: 16, kind: input, shape index: {}]
  %s17 = inlined_call_operand.hbm [shape: bf16[32,32], index: 17, kind: input, shape index: {}]
  %s18 = inlined_call_operand.vmem [shape: f32[1,32], index: 18, kind: input, shape index: {}]
  %s19 = inlined_call_operand.hbm [shape: f32[16,32], index: 19, kind: output, shape index: {}]
  %s20 = sld [smem:[#allocation0]]
  $region165: #{tpu_custom_call.1} parent=0
    _
  %s22 = ssub.s32 1, %s20
  %s23 = scalar_select 0, %s22, %s20
  $region1: #{tpu_custom_call.1} parent=0
    #allocation3 [shape = 'u8[4096]{0}', space=vmem, size = 0x1000, scoped, tag = 'input window, operand 0']
    #allocation4 [shape = 's32[2]{0}', space=sflag, size = 0x8, scoped, tag = 'scoped memory for tpu_custom_call.1']
    #allocation5 [shape = 's32[2]{0}', space=sflag, size = 0x8, scoped, tag = 'scoped memory for tpu_custom_call.1']
    #allocation6 [shape = 'u8[4096]{0}', space=vmem, size = 0x1000, scoped, tag = 'input window, operand 1']
    #allocation7 [shape = 's32[2]{0}', space=sflag, size = 0x8, scoped, tag = 'scoped memory for tpu_custom_call.1']
    #allocation8 [shape = 'u8[4096]{0}', space=vmem, size = 0x1000, scoped, tag = 'input window, operand 2']
    #allocation9 [shape = 'u8[8192]{0}', space=vmem, size = 0x2000, scoped, tag = 'input window, operand 3, single buffered']
    #allocation10 [shape = 's32[1]{0}', space=sflag, size = 0x4, scoped, tag = 'scoped memory for tpu_custom_call.1']
    #allocation11 [shape = 'u8[512]{0}', space=vmem, size = 0x400, scoped, tag = 'input window, operand 4, single buffered']
    #allocation12 [shape = 'u8[8192]{0}', space=vmem, size = 0x2000, scoped, tag = 'input window, operand 5, single buffered']
    #allocation13 [shape = 's32[1]{0}', space=sflag, size = 0x4, scoped, tag = 'scoped memory for tpu_custom_call.1']
    #allocation14 [shape = 'u8[512]{0}', space=vmem, size = 0x400, scoped, tag = 'input window, operand 6, single buffered']
    #allocation15 [shape = 'u8[8192]{0}', space=vmem, size = 0x2000, scoped, tag = 'input window, operand 7, single buffered']
    #allocation16 [shape = 's32[1]{0}', space=sflag, size = 0x4, scoped, tag = 'scoped memory for tpu_custom_call.1']
    #allocation17 [shape = 'u8[512]{0}', space=vmem, size = 0x400, scoped, tag = 'input window, operand 8, single buffered']
    #allocation18 [shape = 'u8[8192]{0}', space=vmem, size = 0x2000, scoped, tag = 'input window, operand 11, single buffered']
    #allocation19 [shape = 's32[1]{0}', space=sflag, size = 0x4, scoped, tag = 'scoped memory for tpu_custom_call.1']
    #allocation20 [shape = 'u8[8192]{0}', space=vmem, size = 0x2000, scoped, tag = 'input window, operand 15, single buffered']
    #allocation21 [shape = 'u8[8192]{0}', space=vmem, size = 0x2000, scoped, tag = 'input window, operand 17, single buffered']
    #allocation22 [shape = 's32[1]{0}', space=sflag, size = 0x4, scoped, tag = 'scoped memory for tpu_custom_call.1']
    #allocation23 [shape = 'u8[8192]{0}', space=vmem, size = 0x2000, scoped, tag = 'output window, operand 0']
    %24 = vsyncpa [#allocation4], 0
    %s25 = scalar_lea.sflag [#allocation4], 1
    %26 = vsyncpa %s25, 0
    %27 = vsyncpa [#allocation7], 0
    %s28 = scalar_lea.sflag [#allocation7], 1
    %29 = vsyncpa %s28, 0
    %30 = vsyncpa [#allocation10], 0
    %31 = vsyncpa [#allocation13], 0
    %32 = vsyncpa [#allocation16], 0
    %33 = vsyncpa [#allocation19], 0
    %34 = vsyncpa [#allocation22], 0
    %35 = vsyncpa [#allocation5], 0
    %s36 = scalar_lea.sflag [#allocation5], 1
    %37 = vsyncpa %s36, 0
    loop: start=0, step=1, limit=4
    $region2: #{tpu_custom_call.1} parent=1 // loop_pre_header
      _
    $region3: #{tpu_custom_call.1} parent=1 // loop_header
      %s39 = sphi 0, %s43
      %p40 = scmp.ge.s32.totalorder %s39, 4
      %s46 = sphi 0, %s58
      %s47 = sphi 0, %s54
      %s48 = sphi 0, %s46
      %s49 = sphi 0, %s47
      %s50 = sphi 0, %s48
      %s51 = sphi 0, %s49
      %s61 = sphi 0, %s63
      %s64 = sphi 0, %s61
      %s65 = sphi 0, %s64
      %s81 = sphi 0, %s65
      %s87 = sphi 0, %s89
      %s90 = sphi 0, %s87
      %s91 = sphi 0, %s90
      %s107 = sphi 0, %s91
      %s113 = sphi 0, %s115
      %s116 = sphi 0, %s113
      %s117 = sphi 0, %s116
      %s133 = sphi 0, %s117
      %s139 = sphi 0, %s141
      %s142 = sphi 0, %s139
      %s143 = sphi 0, %s142
      %s159 = sphi 0, %s143
      %s165 = sphi 0, %s167
      %s168 = sphi 0, %s165
      %s169 = sphi 0, %s168
      %s185 = sphi 0, %s169
      %s191 = sphi 0, %s193
      %s194 = sphi 0, %s191
      %s195 = sphi 0, %s194
      %s211 = sphi 0, %s195
      %s217 = sphi 0, %s219
      %s220 = sphi 0, %s217
      %s221 = sphi 0, %s220
      %s237 = sphi 0, %s221
      %s243 = sphi 0, %s245
      %s246 = sphi 0, %s243
      %s247 = sphi 0, %s246
      %s263 = sphi 0, %s247
      %s269 = sphi 0, %s271
      %s272 = sphi 0, %s269
      %s273 = sphi 0, %s272
      %s289 = sphi 0, %s273
      %s295 = sphi 0, %s297
      %s298 = sphi 0, %s295
      %s299 = sphi 0, %s298
      %s315 = sphi 0, %s299
      %s319 = sphi 0, %s319
      %s321 = sphi 0, %s319
      %s322 = sphi 0, %s321
      %s336 = sphi 0, %s322
      %s340 = sphi 0, %s340
      %s342 = sphi 0, %s340
      %s343 = sphi 0, %s342
      %s357 = sphi 0, %s343
      %s361 = sphi 0, %s361
      %s363 = sphi 0, %s361
      %s364 = sphi 0, %s363
      %s378 = sphi 0, %s364
      %s382 = sphi 0, %s382
      %s384 = sphi 0, %s382
      %s385 = sphi 0, %s384
      %s399 = sphi 0, %s385
      %s403 = sphi 0, %s403
      %s405 = sphi 0, %s403
      %s406 = sphi 0, %s405
      %s420 = sphi 0, %s406
      %s424 = sphi 0, %s424
      %s426 = sphi 0, %s424
      %s427 = sphi 0, %s426
      %s441 = sphi 0, %s427
      %s445 = sphi 0, %s445
      %s447 = sphi 0, %s445
      %s448 = sphi 0, %s447
      %s462 = sphi 0, %s448
      %s466 = sphi 0, %s466
      %s468 = sphi 0, %s466
      %s469 = sphi 0, %s468
      %s483 = sphi 0, %s469
      %s487 = sphi 0, %s487
      %s489 = sphi 0, %s487
      %s490 = sphi 0, %s489
      %s504 = sphi 0, %s490
      %s510 = sphi 0, %s512
      %s513 = sphi 0, %s510
      %s514 = sphi 0, %s513
      %s530 = sphi 0, %s514
    $region4: #{tpu_custom_call.1} parent=1 // loop_header_branch
      %42 = sbr.rel (%p40) target = $region8
    $region5: #{tpu_custom_call.1} parent=1 // loop_body
      %s44 = ssub.s32 %s39, 1
      %s45 = ssub.s32 %s39, 2
      %s52 = sadd.s32 1, %s47
      %p53 = scmp.ge.s32.totalorder %s52, 1
      %s54 = scalar_select %p53, 0, %s52
      %s55 = sadd.s32 1, %s46
      %s56 = scalar_select %p53, %s55, %s46
      %p57 = scmp.ge.s32.totalorder %s56, 2
      %s58 = scalar_select %p57, 0, %s56
      %s59 = ssub.s32 %s46, %s58
      %p60 = scmp.eq.s32.totalorder %s59, 0
      %s62 = sadd.s32 %s61, 1
      %s63 = scalar_select %p60, %s61, %s62
      %p66 = pneg %p60
      %p67 = scmp.eq.s32.totalorder %s39, 1
      %p68 = por %p66, %p67
      %p69 = scmp.ne.s32.totalorder %s61, %s64
      %p70 = scmp.eq.s32.totalorder %s39, 0
      %p71 = por %p69, %p70
      %p72 = scmp.ne.s32.totalorder %s61, %s64
      %p73 = scmp.eq.s32.totalorder %s44, 1
      %p74 = por %p72, %p73
      %p75 = scmp.ne.s32.totalorder %s64, %s65
      %p76 = scmp.eq.s32.totalorder %s44, 0
      %p77 = por %p75, %p76
      %p78 = scmp.ne.s32.totalorder %s64, %s65
      %p79 = scmp.eq.s32.totalorder %s45, 1
      %p80 = por %p78, %p79
      %p82 = scmp.ne.s32.totalorder %s65, %s81
      %p83 = scmp.eq.s32.totalorder %s45, 0
      %p84 = por %p82, %p83
      %s85 = ssub.s32 %s46, %s58
      %p86 = scmp.eq.s32.totalorder %s85, 0
      %s88 = sadd.s32 %s87, 1
      %s89 = scalar_select %p86, %s87, %s88
      %p92 = pneg %p86
      %p93 = scmp.eq.s32.totalorder %s39, 1
      %p94 = por %p92, %p93
      %p95 = scmp.ne.s32.totalorder %s87, %s90
      %p96 = scmp.eq.s32.totalorder %s39, 0
      %p97 = por %p95, %p96
      %p98 = scmp.ne.s32.totalorder %s87, %s90
      %p99 = scmp.eq.s32.totalorder %s44, 1
      %p100 = por %p98, %p99
      %p101 = scmp.ne.s32.totalorder %s90, %s91
      %p102 = scmp.eq.s32.totalorder %s44, 0
      %p103 = por %p101, %p102
      %p104 = scmp.ne.s32.totalorder %s90, %s91
      %p105 = scmp.eq.s32.totalorder %s45, 1
      %p106 = por %p104, %p105
      %p108 = scmp.ne.s32.totalorder %s91, %s107
      %p109 = scmp.eq.s32.totalorder %s45, 0
      %p110 = por %p108, %p109
      %s111 = ssub.s32 %s46, %s58
      %p112 = scmp.eq.s32.totalorder %s111, 0
      %s114 = sadd.s32 %s113, 1
      %s115 = scalar_select %p112, %s113, %s114
      %p118 = pneg %p112
      %p119 = scmp.eq.s32.totalorder %s39, 1
      %p120 = por %p118, %p119
      %p121 = scmp.ne.s32.totalorder %s113, %s116
      %p122 = scmp.eq.s32.totalorder %s39, 0
      %p123 = por %p121, %p122
      %p124 = scmp.ne.s32.totalorder %s113, %s116
      %p125 = scmp.eq.s32.totalorder %s44, 1
      %p126 = por %p124, %p125
      %p127 = scmp.ne.s32.totalorder %s116, %s117
      %p128 = scmp.eq.s32.totalorder %s44, 0
      %p129 = por %p127, %p128
      %p130 = scmp.ne.s32.totalorder %s116, %s117
      %p131 = scmp.eq.s32.totalorder %s45, 1
      %p132 = por %p130, %p131
      %p134 = scmp.ne.s32.totalorder %s117, %s133
      %p135 = scmp.eq.s32.totalorder %s45, 0
      %p136 = por %p134, %p135
      %s137 = ssub.s32 %s47, %s54
      %p138 = scmp.eq.s32.totalorder %s137, 0
      %s140 = sadd.s32 %s139, 1
      %s141 = scalar_select %p138, %s139, %s140
      %p144 = pneg %p138
      %p145 = scmp.eq.s32.totalorder %s39, 1
      %p146 = por %p144, %p145
      %p147 = scmp.ne.s32.totalorder %s139, %s142
      %p148 = scmp.eq.s32.totalorder %s39, 0
      %p149 = por %p147, %p148
      %p150 = scmp.ne.s32.totalorder %s139, %s142
      %p151 = scmp.eq.s32.totalorder %s44, 1
      %p152 = por %p150, %p151
      %p153 = scmp.ne.s32.totalorder %s142, %s143
      %p154 = scmp.eq.s32.totalorder %s44, 0
      %p155 = por %p153, %p154
      %p156 = scmp.ne.s32.totalorder %s142, %s143
      %p157 = scmp.eq.s32.totalorder %s45, 1
      %p158 = por %p156, %p157
      %p160 = scmp.ne.s32.totalorder %s143, %s159
      %p161 = scmp.eq.s32.totalorder %s45, 0
      %p162 = por %p160, %p161
      %s163 = ssub.s32 %s47, %s54
      %p164 = scmp.eq.s32.totalorder %s163, 0
      %s166 = sadd.s32 %s165, 1
      %s167 = scalar_select %p164, %s165, %s166
      %p170 = pneg %p164
      %p171 = scmp.eq.s32.totalorder %s39, 1
      %p172 = por %p170, %p171
      %p173 = scmp.ne.s32.totalorder %s165, %s168
      %p174 = scmp.eq.s32.totalorder %s39, 0
      %p175 = por %p173, %p174
      %p176 = scmp.ne.s32.totalorder %s165, %s168
      %p177 = scmp.eq.s32.totalorder %s44, 1
      %p178 = por %p176, %p177
      %p179 = scmp.ne.s32.totalorder %s168, %s169
      %p180 = scmp.eq.s32.totalorder %s44, 0
      %p181 = por %p179, %p180
      %p182 = scmp.ne.s32.totalorder %s168, %s169
      %p183 = scmp.eq.s32.totalorder %s45, 1
      %p184 = por %p182, %p183
      %p186 = scmp.ne.s32.totalorder %s169, %s185
      %p187 = scmp.eq.s32.totalorder %s45, 0
      %p188 = por %p186, %p187
      %s189 = ssub.s32 %s47, %s54
      %p190 = scmp.eq.s32.totalorder %s189, 0
      %s192 = sadd.s32 %s191, 1
      %s193 = scalar_select %p190, %s191, %s192
      %p196 = pneg %p190
      %p197 = scmp.eq.s32.totalorder %s39, 1
      %p198 = por %p196, %p197
      %p199 = scmp.ne.s32.totalorder %s191, %s194
      %p200 = scmp.eq.s32.totalorder %s39, 0
      %p201 = por %p199, %p200
      %p202 = scmp.ne.s32.totalorder %s191, %s194
      %p203 = scmp.eq.s32.totalorder %s44, 1
      %p204 = por %p202, %p203
      %p205 = scmp.ne.s32.totalorder %s194, %s195
      %p206 = scmp.eq.s32.totalorder %s44, 0
      %p207 = por %p205, %p206
      %p208 = scmp.ne.s32.totalorder %s194, %s195
      %p209 = scmp.eq.s32.totalorder %s45, 1
      %p210 = por %p208, %p209
      %p212 = scmp.ne.s32.totalorder %s195, %s211
      %p213 = scmp.eq.s32.totalorder %s45, 0
      %p214 = por %p212, %p213
      %s215 = ssub.s32 %s47, %s54
      %p216 = scmp.eq.s32.totalorder %s215, 0
      %s218 = sadd.s32 %s217, 1
      %s219 = scalar_select %p216, %s217, %s218
      %p222 = pneg %p216
      %p223 = scmp.eq.s32.totalorder %s39, 1
      %p224 = por %p222, %p223
      %p225 = scmp.ne.s32.totalorder %s217, %s220
      %p226 = scmp.eq.s32.totalorder %s39, 0
      %p227 = por %p225, %p226
      %p228 = scmp.ne.s32.totalorder %s217, %s220
      %p229 = scmp.eq.s32.totalorder %s44, 1
      %p230 = por %p228, %p229
      %p231 = scmp.ne.s32.totalorder %s220, %s221
      %p232 = scmp.eq.s32.totalorder %s44, 0
      %p233 = por %p231, %p232
      %p234 = scmp.ne.s32.totalorder %s220, %s221
      %p235 = scmp.eq.s32.totalorder %s45, 1
      %p236 = por %p234, %p235
      %p238 = scmp.ne.s32.totalorder %s221, %s237
      %p239 = scmp.eq.s32.totalorder %s45, 0
      %p240 = por %p238, %p239
      %s241 = ssub.s32 %s47, %s54
      %p242 = scmp.eq.s32.totalorder %s241, 0
      %s244 = sadd.s32 %s243, 1
      %s245 = scalar_select %p242, %s243, %s244
      %p248 = pneg %p242
      %p249 = scmp.eq.s32.totalorder %s39, 1
      %p250 = por %p248, %p249
      %p251 = scmp.ne.s32.totalorder %s243, %s246
      %p252 = scmp.eq.s32.totalorder %s39, 0
      %p253 = por %p251, %p252
      %p254 = scmp.ne.s32.totalorder %s243, %s246
      %p255 = scmp.eq.s32.totalorder %s44, 1
      %p256 = por %p254, %p255
      %p257 = scmp.ne.s32.totalorder %s246, %s247
      %p258 = scmp.eq.s32.totalorder %s44, 0
      %p259 = por %p257, %p258
      %p260 = scmp.ne.s32.totalorder %s246, %s247
      %p261 = scmp.eq.s32.totalorder %s45, 1
      %p262 = por %p260, %p261
      %p264 = scmp.ne.s32.totalorder %s247, %s263
      %p265 = scmp.eq.s32.totalorder %s45, 0
      %p266 = por %p264, %p265
      %s267 = ssub.s32 %s47, %s54
      %p268 = scmp.eq.s32.totalorder %s267, 0
      %s270 = sadd.s32 %s269, 1
      %s271 = scalar_select %p268, %s269, %s270
      %p274 = pneg %p268
      %p275 = scmp.eq.s32.totalorder %s39, 1
      %p276 = por %p274, %p275
      %p277 = scmp.ne.s32.totalorder %s269, %s272
      %p278 = scmp.eq.s32.totalorder %s39, 0
      %p279 = por %p277, %p278
      %p280 = scmp.ne.s32.totalorder %s269, %s272
      %p281 = scmp.eq.s32.totalorder %s44, 1
      %p282 = por %p280, %p281
      %p283 = scmp.ne.s32.totalorder %s272, %s273
      %p284 = scmp.eq.s32.totalorder %s44, 0
      %p285 = por %p283, %p284
      %p286 = scmp.ne.s32.totalorder %s272, %s273
      %p287 = scmp.eq.s32.totalorder %s45, 1
      %p288 = por %p286, %p287
      %p290 = scmp.ne.s32.totalorder %s273, %s289
      %p291 = scmp.eq.s32.totalorder %s45, 0
      %p292 = por %p290, %p291
      %s293 = ssub.s32 %s47, %s54
      %p294 = scmp.eq.s32.totalorder %s293, 0
      %s296 = sadd.s32 %s295, 1
      %s297 = scalar_select %p294, %s295, %s296
      %p300 = pneg %p294
      %p301 = scmp.eq.s32.totalorder %s39, 1
      %p302 = por %p300, %p301
      %p303 = scmp.ne.s32.totalorder %s295, %s298
      %p304 = scmp.eq.s32.totalorder %s39, 0
      %p305 = por %p303, %p304
      %p306 = scmp.ne.s32.totalorder %s295, %s298
      %p307 = scmp.eq.s32.totalorder %s44, 1
      %p308 = por %p306, %p307
      %p309 = scmp.ne.s32.totalorder %s298, %s299
      %p310 = scmp.eq.s32.totalorder %s44, 0
      %p311 = por %p309, %p310
      %p312 = scmp.ne.s32.totalorder %s298, %s299
      %p313 = scmp.eq.s32.totalorder %s45, 1
      %p314 = por %p312, %p313
      %p316 = scmp.ne.s32.totalorder %s299, %s315
      %p317 = scmp.eq.s32.totalorder %s45, 0
      %p318 = por %p316, %p317
      %s320 = sadd.s32 %s319, 1
      %p323 = scmp.eq.s32.totalorder %s39, 1
      %p324 = scmp.ne.s32.totalorder %s319, %s321
      %p325 = scmp.eq.s32.totalorder %s39, 0
      %p326 = por %p324, %p325
      %p327 = scmp.ne.s32.totalorder %s319, %s321
      %p328 = scmp.eq.s32.totalorder %s44, 1
      %p329 = por %p327, %p328
      %p330 = scmp.ne.s32.totalorder %s321, %s322
      %p331 = scmp.eq.s32.totalorder %s44, 0
      %p332 = por %p330, %p331
      %p333 = scmp.ne.s32.totalorder %s321, %s322
      %p334 = scmp.eq.s32.totalorder %s45, 1
      %p335 = por %p333, %p334
      %p337 = scmp.ne.s32.totalorder %s322, %s336
      %p338 = scmp.eq.s32.totalorder %s45, 0
      %p339 = por %p337, %p338
      %s341 = sadd.s32 %s340, 1
      %p344 = scmp.eq.s32.totalorder %s39, 1
      %p345 = scmp.ne.s32.totalorder %s340, %s342
      %p346 = scmp.eq.s32.totalorder %s39, 0
      %p347 = por %p345, %p346
      %p348 = scmp.ne.s32.totalorder %s340, %s342
      %p349 = scmp.eq.s32.totalorder %s44, 1
      %p350 = por %p348, %p349
      %p351 = scmp.ne.s32.totalorder %s342, %s343
      %p352 = scmp.eq.s32.totalorder %s44, 0
      %p353 = por %p351, %p352
      %p354 = scmp.ne.s32.totalorder %s342, %s343
      %p355 = scmp.eq.s32.totalorder %s45, 1
      %p356 = por %p354, %p355
      %p358 = scmp.ne.s32.totalorder %s343, %s357
      %p359 = scmp.eq.s32.totalorder %s45, 0
      %p360 = por %p358, %p359
      %s362 = sadd.s32 %s361, 1
      %p365 = scmp.eq.s32.totalorder %s39, 1
      %p366 = scmp.ne.s32.totalorder %s361, %s363
      %p367 = scmp.eq.s32.totalorder %s39, 0
      %p368 = por %p366, %p367
      %p369 = scmp.ne.s32.totalorder %s361, %s363
      %p370 = scmp.eq.s32.totalorder %s44, 1
      %p371 = por %p369, %p370
      %p372 = scmp.ne.s32.totalorder %s363, %s364
      %p373 = scmp.eq.s32.totalorder %s44, 0
      %p374 = por %p372, %p373
      %p375 = scmp.ne.s32.totalorder %s363, %s364
      %p376 = scmp.eq.s32.totalorder %s45, 1
      %p377 = por %p375, %p376
      %p379 = scmp.ne.s32.totalorder %s364, %s378
      %p380 = scmp.eq.s32.totalorder %s45, 0
      %p381 = por %p379, %p380
      %s383 = sadd.s32 %s382, 1
      %p386 = scmp.eq.s32.totalorder %s39, 1
      %p387 = scmp.ne.s32.totalorder %s382, %s384
      %p388 = scmp.eq.s32.totalorder %s39, 0
      %p389 = por %p387, %p388
      %p390 = scmp.ne.s32.totalorder %s382, %s384
      %p391 = scmp.eq.s32.totalorder %s44, 1
      %p392 = por %p390, %p391
      %p393 = scmp.ne.s32.totalorder %s384, %s385
      %p394 = scmp.eq.s32.totalorder %s44, 0
      %p395 = por %p393, %p394
      %p396 = scmp.ne.s32.totalorder %s384, %s385
      %p397 = scmp.eq.s32.totalorder %s45, 1
      %p398 = por %p396, %p397
      %p400 = scmp.ne.s32.totalorder %s385, %s399
      %p401 = scmp.eq.s32.totalorder %s45, 0
      %p402 = por %p400, %p401
      %s404 = sadd.s32 %s403, 1
      %p407 = scmp.eq.s32.totalorder %s39, 1
      %p408 = scmp.ne.s32.totalorder %s403, %s405
      %p409 = scmp.eq.s32.totalorder %s39, 0
      %p410 = por %p408, %p409
      %p411 = scmp.ne.s32.totalorder %s403, %s405
      %p412 = scmp.eq.s32.totalorder %s44, 1
      %p413 = por %p411, %p412
      %p414 = scmp.ne.s32.totalorder %s405, %s406
      %p415 = scmp.eq.s32.totalorder %s44, 0
      %p416 = por %p414, %p415
      %p417 = scmp.ne.s32.totalorder %s405, %s406
      %p418 = scmp.eq.s32.totalorder %s45, 1
      %p419 = por %p417, %p418
      %p421 = scmp.ne.s32.totalorder %s406, %s420
      %p422 = scmp.eq.s32.totalorder %s45, 0
      %p423 = por %p421, %p422
      %s425 = sadd.s32 %s424, 1
      %p428 = scmp.eq.s32.totalorder %s39, 1
      %p429 = scmp.ne.s32.totalorder %s424, %s426
      %p430 = scmp.eq.s32.totalorder %s39, 0
      %p431 = por %p429, %p430
      %p432 = scmp.ne.s32.totalorder %s424, %s426
      %p433 = scmp.eq.s32.totalorder %s44, 1
      %p434 = por %p432, %p433
      %p435 = scmp.ne.s32.totalorder %s426, %s427
      %p436 = scmp.eq.s32.totalorder %s44, 0
      %p437 = por %p435, %p436
      %p438 = scmp.ne.s32.totalorder %s426, %s427
      %p439 = scmp.eq.s32.totalorder %s45, 1
      %p440 = por %p438, %p439
      %p442 = scmp.ne.s32.totalorder %s427, %s441
      %p443 = scmp.eq.s32.totalorder %s45, 0
      %p444 = por %p442, %p443
      %s446 = sadd.s32 %s445, 1
      %p449 = scmp.eq.s32.totalorder %s39, 1
      %p450 = scmp.ne.s32.totalorder %s445, %s447
      %p451 = scmp.eq.s32.totalorder %s39, 0
      %p452 = por %p450, %p451
      %p453 = scmp.ne.s32.totalorder %s445, %s447
      %p454 = scmp.eq.s32.totalorder %s44, 1
      %p455 = por %p453, %p454
      %p456 = scmp.ne.s32.totalorder %s447, %s448
      %p457 = scmp.eq.s32.totalorder %s44, 0
      %p458 = por %p456, %p457
      %p459 = scmp.ne.s32.totalorder %s447, %s448
      %p460 = scmp.eq.s32.totalorder %s45, 1
      %p461 = por %p459, %p460
      %p463 = scmp.ne.s32.totalorder %s448, %s462
      %p464 = scmp.eq.s32.totalorder %s45, 0
      %p465 = por %p463, %p464
      %s467 = sadd.s32 %s466, 1
      %p470 = scmp.eq.s32.totalorder %s39, 1
      %p471 = scmp.ne.s32.totalorder %s466, %s468
      %p472 = scmp.eq.s32.totalorder %s39, 0
      %p473 = por %p471, %p472
      %p474 = scmp.ne.s32.totalorder %s466, %s468
      %p475 = scmp.eq.s32.totalorder %s44, 1
      %p476 = por %p474, %p475
      %p477 = scmp.ne.s32.totalorder %s468, %s469
      %p478 = scmp.eq.s32.totalorder %s44, 0
      %p479 = por %p477, %p478
      %p480 = scmp.ne.s32.totalorder %s468, %s469
      %p481 = scmp.eq.s32.totalorder %s45, 1
      %p482 = por %p480, %p481
      %p484 = scmp.ne.s32.totalorder %s469, %s483
      %p485 = scmp.eq.s32.totalorder %s45, 0
      %p486 = por %p484, %p485
      %s488 = sadd.s32 %s487, 1
      %p491 = scmp.eq.s32.totalorder %s39, 1
      %p492 = scmp.ne.s32.totalorder %s487, %s489
      %p493 = scmp.eq.s32.totalorder %s39, 0
      %p494 = por %p492, %p493
      %p495 = scmp.ne.s32.totalorder %s487, %s489
      %p496 = scmp.eq.s32.totalorder %s44, 1
      %p497 = por %p495, %p496
      %p498 = scmp.ne.s32.totalorder %s489, %s490
      %p499 = scmp.eq.s32.totalorder %s44, 0
      %p500 = por %p498, %p499
      %p501 = scmp.ne.s32.totalorder %s489, %s490
      %p502 = scmp.eq.s32.totalorder %s45, 1
      %p503 = por %p501, %p502
      %p505 = scmp.ne.s32.totalorder %s490, %s504
      %p506 = scmp.eq.s32.totalorder %s45, 0
      %p507 = por %p505, %p506
      %s508 = ssub.s32 %s46, %s58
      %p509 = scmp.eq.s32.totalorder %s508, 0
      %s511 = sadd.s32 %s510, 1
      %s512 = scalar_select %p509, %s510, %s511
      %p515 = pneg %p509
      %p516 = scmp.eq.s32.totalorder %s39, 1
      %p517 = por %p515, %p516
      %p518 = scmp.ne.s32.totalorder %s510, %s513
      %p519 = scmp.eq.s32.totalorder %s39, 0
      %p520 = por %p518, %p519
      %p521 = scmp.ne.s32.totalorder %s510, %s513
      %p522 = scmp.eq.s32.totalorder %s44, 1
      %p523 = por %p521, %p522
      %p524 = scmp.ne.s32.totalorder %s513, %s514
      %p525 = scmp.eq.s32.totalorder %s44, 0
      %p526 = por %p524, %p525
      %p527 = scmp.ne.s32.totalorder %s513, %s514
      %p528 = scmp.eq.s32.totalorder %s45, 1
      %p529 = por %p527, %p528
      %p531 = scmp.ne.s32.totalorder %s514, %s530
      %p532 = scmp.eq.s32.totalorder %s45, 0
      %p533 = por %p531, %p532
      %p534 = scmp.le.s32.totalorder 1, %s39
      %p535 = scmp.lt.s32.totalorder %s39, 3
      %p536 = pnand %p534, %p535
      %p537 = pneg %p536
      // Predicated region
      $region9: #{tpu_custom_call.1} parent=5 // pred_check
        _
      $region10: #{tpu_custom_call.1} parent=5 // pred_check_branch
        %539 = sbr.rel (%p536) target = $region12
      $region11: #{tpu_custom_call.1} parent=5 // pred_region
        %s540 = ssub.s32 %s39, 1
        // Predicated region
        $region13: #{tpu_custom_call.1} parent=11 // pred_check
          %p541 = pneg %p155
        $region14: #{tpu_custom_call.1} parent=11 // pred_check_branch
          %543 = sbr.rel (%p541) target = $region16
        $region15: #{tpu_custom_call.1} parent=11 // pred_region
          %s545 = ssub.s32 256, 256
          %546 = vsyncadd [#allocation10], %s545
          %s547 = smul.addr %s49, 4
          %s548 = smul.addr %s547, 64
          %s549 = scalar_lea.hbm %s3, %s548
          %s550 = sshll.u32 [#allocation9], 4
          %s551 = int_to_ptr.vmem [resolvable:$true] %s550
          %556 = dma.hbm_to_vmem [thread:$0]  %s549, 256, %s551, [#allocation10], 64, 64, 4
        $region16: #{tpu_custom_call.1} parent=11 // pred_fallthru
          _
        // Predicated region
        $region17: #{tpu_custom_call.1} parent=11 // pred_check
          %p557 = pneg %p181
        $region18: #{tpu_custom_call.1} parent=11 // pred_check_branch
          %559 = sbr.rel (%p557) target = $region20
        $region19: #{tpu_custom_call.1} parent=11 // pred_region
          %s561 = ssub.s32 16, 16
          %562 = vsyncadd [#allocation10], %s561
          %s563 = smul.addr %s49, 16
          %s564 = scalar_lea.hbm %s4, %s563
          %s566 = sshll.u32 [#allocation11], 4
          %s567 = int_to_ptr.vmem [resolvable:$true] %s566
          %569 = dma.hbm_to_vmem [thread:$0]  %s564, 16, %s567, [#allocation10]
        $region20: #{tpu_custom_call.1} parent=11 // pred_fallthru
          _
        // Predicated region
        $region21: #{tpu_custom_call.1} parent=11 // pred_check
          %p570 = pneg %p207
        $region22: #{tpu_custom_call.1} parent=11 // pred_check_branch
          %572 = sbr.rel (%p570) target = $region24
        $region23: #{tpu_custom_call.1} parent=11 // pred_region
          %s574 = ssub.s32 256, 256
          %575 = vsyncadd [#allocation13], %s574
          %s576 = smul.addr %s49, 4
          %s577 = smul.addr %s576, 64
          %s578 = scalar_lea.hbm %s5, %s577
          %s579 = sshll.u32 [#allocation12], 4
          %s580 = int_to_ptr.vmem [resolvable:$true] %s579
          %585 = dma.hbm_to_vmem [thread:$0]  %s578, 256, %s580, [#allocation13], 64, 64, 4
        $region24: #{tpu_custom_call.1} parent=11 // pred_fallthru
          _
        // Predicated region
        $region25: #{tpu_custom_call.1} parent=11 // pred_check
          %p586 = pneg %p233
        $region26: #{tpu_custom_call.1} parent=11 // pred_check_branch
          %588 = sbr.rel (%p586) target = $region28
        $region27: #{tpu_custom_call.1} parent=11 // pred_region
          %s590 = ssub.s32 16, 16
          %591 = vsyncadd [#allocation13], %s590
          %s592 = smul.addr %s49, 16
          %s593 = scalar_lea.hbm %s6, %s592
          %s595 = sshll.u32 [#allocation14], 4
          %s596 = int_to_ptr.vmem [resolvable:$true] %s595
          %598 = dma.hbm_to_vmem [thread:$0]  %s593, 16, %s596, [#allocation13]
        $region28: #{tpu_custom_call.1} parent=11 // pred_fallthru
          _
        // Predicated region
        $region29: #{tpu_custom_call.1} parent=11 // pred_check
          %p599 = pneg %p259
        $region30: #{tpu_custom_call.1} parent=11 // pred_check_branch
          %601 = sbr.rel (%p599) target = $region32
        $region31: #{tpu_custom_call.1} parent=11 // pred_region
          %s603 = ssub.s32 256, 256
          %604 = vsyncadd [#allocation16], %s603
          %s605 = smul.addr %s49, 4
          %s606 = smul.addr %s605, 64
          %s607 = scalar_lea.hbm %s7, %s606
          %s608 = sshll.u32 [#allocation15], 4
          %s609 = int_to_ptr.vmem [resolvable:$true] %s608
          %614 = dma.hbm_to_vmem [thread:$0]  %s607, 256, %s609, [#allocation16], 64, 64, 4
        $region32: #{tpu_custom_call.1} parent=11 // pred_fallthru
          _
        // Predicated region
        $region33: #{tpu_custom_call.1} parent=11 // pred_check
          %p615 = pneg %p285
        $region34: #{tpu_custom_call.1} parent=11 // pred_check_branch
          %617 = sbr.rel (%p615) target = $region36
        $region35: #{tpu_custom_call.1} parent=11 // pred_region
          %s619 = ssub.s32 16, 16
          %620 = vsyncadd [#allocation16], %s619
          %s621 = smul.addr %s49, 16
          %s622 = scalar_lea.hbm %s8, %s621
          %s624 = sshll.u32 [#allocation17], 4
          %s625 = int_to_ptr.vmem [resolvable:$true] %s624
          %627 = dma.hbm_to_vmem [thread:$0]  %s622, 16, %s625, [#allocation16]
        $region36: #{tpu_custom_call.1} parent=11 // pred_fallthru
          _
        // Predicated region
        $region37: #{tpu_custom_call.1} parent=11 // pred_check
          %p628 = pneg %p311
        $region38: #{tpu_custom_call.1} parent=11 // pred_check_branch
          %630 = sbr.rel (%p628) target = $region40
        $region39: #{tpu_custom_call.1} parent=11 // pred_region
          %p631 = scmp.lt.s32.totalorder %s49, 0
          %s632 = scalar_select %p631, %s49, 0
          %s633 = smul.addr %s632, 4
          %s634 = smul.addr %s633, 4
          %s635 = scalar_lea.vmem %s9, %s634
        $region40: #{tpu_custom_call.1} parent=11 // pred_fallthru
          _
        // Predicated region
        $region41: #{tpu_custom_call.1} parent=11 // pred_check
          %p636 = pneg %p332
        $region42: #{tpu_custom_call.1} parent=11 // pred_check_branch
          %638 = sbr.rel (%p636) target = $region44
        $region43: #{tpu_custom_call.1} parent=11 // pred_region
          _
        $region44: #{tpu_custom_call.1} parent=11 // pred_fallthru
          _
        // Predicated region
        $region45: #{tpu_custom_call.1} parent=11 // pred_check
          %p639 = pneg %p353
        $region46: #{tpu_custom_call.1} parent=11 // pred_check_branch
          %641 = sbr.rel (%p639) target = $region48
        $region47: #{tpu_custom_call.1} parent=11 // pred_region
          %s643 = ssub.s32 256, 256
          %644 = vsyncadd [#allocation19], %s643
          %s645 = sshll.u32 [#allocation18], 4
          %s646 = int_to_ptr.vmem [resolvable:$true] %s645
          %651 = dma.hbm_to_vmem [thread:$0]  %s11, 256, %s646, [#allocation19], 64, 64, 4
        $region48: #{tpu_custom_call.1} parent=11 // pred_fallthru
          _
        // Predicated region
        $region49: #{tpu_custom_call.1} parent=11 // pred_check
          %p652 = pneg %p374
        $region50: #{tpu_custom_call.1} parent=11 // pred_check_branch
          %654 = sbr.rel (%p652) target = $region52
        $region51: #{tpu_custom_call.1} parent=11 // pred_region
          _
        $region52: #{tpu_custom_call.1} parent=11 // pred_fallthru
          _
        // Predicated region
        $region53: #{tpu_custom_call.1} parent=11 // pred_check
          %p655 = pneg %p395
        $region54: #{tpu_custom_call.1} parent=11 // pred_check_branch
          %657 = sbr.rel (%p655) target = $region56
        $region55: #{tpu_custom_call.1} parent=11 // pred_region
          _
        $region56: #{tpu_custom_call.1} parent=11 // pred_fallthru
          _
        // Predicated region
        $region57: #{tpu_custom_call.1} parent=11 // pred_check
          %p658 = pneg %p416
        $region58: #{tpu_custom_call.1} parent=11 // pred_check_branch
          %660 = sbr.rel (%p658) target = $region60
        $region59: #{tpu_custom_call.1} parent=11 // pred_region
          _
        $region60: #{tpu_custom_call.1} parent=11 // pred_fallthru
          _
        // Predicated region
        $region61: #{tpu_custom_call.1} parent=11 // pred_check
          %p661 = pneg %p437
        $region62: #{tpu_custom_call.1} parent=11 // pred_check_branch
          %663 = sbr.rel (%p661) target = $region64
        $region63: #{tpu_custom_call.1} parent=11 // pred_region
          %s665 = ssub.s32 256, 256
          %666 = vsyncadd [#allocation19], %s665
          %s667 = sshll.u32 [#allocation20], 4
          %s668 = int_to_ptr.vmem [resolvable:$true] %s667
          %673 = dma.hbm_to_vmem [thread:$0]  %s15, 256, %s668, [#allocation19], 64, 64, 4
        $region64: #{tpu_custom_call.1} parent=11 // pred_fallthru
          _
        // Predicated region
        $region65: #{tpu_custom_call.1} parent=11 // pred_check
          %p674 = pneg %p458
        $region66: #{tpu_custom_call.1} parent=11 // pred_check_branch
          %676 = sbr.rel (%p674) target = $region68
        $region67: #{tpu_custom_call.1} parent=11 // pred_region
          _
        $region68: #{tpu_custom_call.1} parent=11 // pred_fallthru
          _
        // Predicated region
        $region69: #{tpu_custom_call.1} parent=11 // pred_check
          %p677 = pneg %p479
        $region70: #{tpu_custom_call.1} parent=11 // pred_check_branch
          %679 = sbr.rel (%p677) target = $region72
        $region71: #{tpu_custom_call.1} parent=11 // pred_region
          %s681 = ssub.s32 256, 256
          %682 = vsyncadd [#allocation22], %s681
          %s683 = sshll.u32 [#allocation21], 4
          %s684 = int_to_ptr.vmem [resolvable:$true] %s683
          %689 = dma.hbm_to_vmem [thread:$0]  %s17, 256, %s684, [#allocation22], 64, 64, 4
        $region72: #{tpu_custom_call.1} parent=11 // pred_fallthru
          _
        // Predicated region
        $region73: #{tpu_custom_call.1} parent=11 // pred_check
          %p690 = pneg %p500
        $region74: #{tpu_custom_call.1} parent=11 // pred_check_branch
          %692 = sbr.rel (%p690) target = $region76
        $region75: #{tpu_custom_call.1} parent=11 // pred_region
          _
        $region76: #{tpu_custom_call.1} parent=11 // pred_fallthru
          _
      $region12: #{tpu_custom_call.1} parent=5 // pred_fallthru
        _
      %p693 = scmp.lt.s32.totalorder %s39, 2
      // Predicated region
      $region77: #{tpu_custom_call.1} parent=5 // pred_check
        %p694 = pneg %p693
      $region78: #{tpu_custom_call.1} parent=5 // pred_check_branch
        %696 = sbr.rel (%p694) target = $region80
      $region79: #{tpu_custom_call.1} parent=5 // pred_region
        // Predicated region
        $region81: #{tpu_custom_call.1} parent=79 // pred_check
          %p697 = pneg %p71
        $region82: #{tpu_custom_call.1} parent=79 // pred_check_branch
          %699 = sbr.rel (%p697) target = $region84
        $region83: #{tpu_custom_call.1} parent=79 // pred_region
          %s700 = sand.u32 %s61, 1
          %s701 = scalar_lea.sflag [#allocation4], %s700
          %s702 = sand.u32 %s61, 1
          %s703 = smul.addr %s702, 4
          %s704 = scalar_lea.vmem [#allocation3], %s703
          %s706 = ssub.s32 64, 64
          %707 = vsyncadd %s701, %s706
          %s708 = smul.addr %s46, 64
          %s709 = scalar_lea.hbm %s0, %s708
          %s711 = sshll.u32 %s704, 4
          %s712 = int_to_ptr.vmem [resolvable:$true] %s711
          %714 = dma.hbm_to_vmem [thread:$0]  %s709, 64, %s712, %s701
        $region84: #{tpu_custom_call.1} parent=79 // pred_fallthru
          _
        // Predicated region
        $region85: #{tpu_custom_call.1} parent=79 // pred_check
          %p715 = pneg %p97
        $region86: #{tpu_custom_call.1} parent=79 // pred_check_branch
          %717 = sbr.rel (%p715) target = $region88
        $region87: #{tpu_custom_call.1} parent=79 // pred_region
          %s718 = sand.u32 %s39, 1
          %s719 = scalar_lea.sflag [#allocation7], %s718
          %s720 = sand.u32 %s87, 1
          %s721 = smul.addr %s720, 4
          %s722 = scalar_lea.vmem [#allocation6], %s721
          %s724 = ssub.s32 64, 64
          %725 = vsyncadd %s719, %s724
          %s726 = smul.addr %s46, 64
          %s727 = scalar_lea.hbm %s1, %s726
          %s729 = sshll.u32 %s722, 4
          %s730 = int_to_ptr.vmem [resolvable:$true] %s729
          %732 = dma.hbm_to_vmem [thread:$0]  %s727, 64, %s730, %s719
        $region88: #{tpu_custom_call.1} parent=79 // pred_fallthru
          _
        // Predicated region
        $region89: #{tpu_custom_call.1} parent=79 // pred_check
          %p733 = pneg %p123
        $region90: #{tpu_custom_call.1} parent=79 // pred_check_branch
          %735 = sbr.rel (%p733) target = $region92
        $region91: #{tpu_custom_call.1} parent=79 // pred_region
          %s736 = sand.u32 %s39, 1
          %s737 = scalar_lea.sflag [#allocation7], %s736
          %s738 = sand.u32 %s113, 1
          %s739 = smul.addr %s738, 4
          %s740 = scalar_lea.vmem [#allocation8], %s739
          %s742 = ssub.s32 64, 64
          %743 = vsyncadd %s737, %s742
          %s744 = smul.addr %s46, 64
          %s745 = scalar_lea.hbm %s2, %s744
          %s747 = sshll.u32 %s740, 4
          %s748 = int_to_ptr.vmem [resolvable:$true] %s747
          %750 = dma.hbm_to_vmem [thread:$0]  %s745, 64, %s748, %s737
        $region92: #{tpu_custom_call.1} parent=79 // pred_fallthru
          _
      $region80: #{tpu_custom_call.1} parent=5 // pred_fallthru
        _
      %p751 = scmp.le.s32.totalorder 1, %s39
      %p752 = scmp.lt.s32.totalorder %s39, 3
      %p753 = pnand %p751, %p752
      %p754 = pneg %p753
      // Predicated region
      $region93: #{tpu_custom_call.1} parent=5 // pred_check
        _
      $region94: #{tpu_custom_call.1} parent=5 // pred_check_branch
        %756 = sbr.rel (%p753) target = $region96
      $region95: #{tpu_custom_call.1} parent=5 // pred_region
        %s757 = ssub.s32 %s39, 1
        %s758 = sand.u32 %s64, 1
        %s759 = scalar_lea.sflag [#allocation4], %s758
        %s760 = sand.u32 %s64, 1
        %s761 = smul.addr %s760, 4
        %s762 = scalar_lea.vmem [#allocation3], %s761
        // Predicated region
        $region97: #{tpu_custom_call.1} parent=95 // pred_check
          %p763 = pneg %p77
        $region98: #{tpu_custom_call.1} parent=95 // pred_check_branch
          %765 = sbr.rel (%p763) target = $region100
        $region99: #{tpu_custom_call.1} parent=95 // pred_region
          %766 = dma.done %s759, 64
        $region100: #{tpu_custom_call.1} parent=95 // pred_fallthru
          _
        %s767 = sand.u32 %s44, 1
        %s768 = scalar_lea.sflag [#allocation7], %s767
        %s769 = sand.u32 %s90, 1
        %s770 = smul.addr %s769, 4
        %s771 = scalar_lea.vmem [#allocation6], %s770
        // Predicated region
        $region101: #{tpu_custom_call.1} parent=95 // pred_check
          %p772 = pneg %p103
        $region102: #{tpu_custom_call.1} parent=95 // pred_check_branch
          %774 = sbr.rel (%p772) target = $region104
        $region103: #{tpu_custom_call.1} parent=95 // pred_region
          %775 = dma.done %s768, 64
        $region104: #{tpu_custom_call.1} parent=95 // pred_fallthru
          _
        %s776 = sand.u32 %s44, 1
        %s777 = scalar_lea.sflag [#allocation7], %s776
        %s778 = sand.u32 %s116, 1
        %s779 = smul.addr %s778, 4
        %s780 = scalar_lea.vmem [#allocation8], %s779
        // Predicated region
        $region105: #{tpu_custom_call.1} parent=95 // pred_check
          %p781 = pneg %p129
        $region106: #{tpu_custom_call.1} parent=95 // pred_check_branch
          %783 = sbr.rel (%p781) target = $region108
        $region107: #{tpu_custom_call.1} parent=95 // pred_region
          %784 = dma.done %s777, 64
        $region108: #{tpu_custom_call.1} parent=95 // pred_fallthru
          _
        // Predicated region
        $region109: #{tpu_custom_call.1} parent=95 // pred_check
          %p785 = pneg %p155
        $region110: #{tpu_custom_call.1} parent=95 // pred_check_branch
          %787 = sbr.rel (%p785) target = $region112
        $region111: #{tpu_custom_call.1} parent=95 // pred_region
          %788 = dma.done [#allocation10], 256
        $region112: #{tpu_custom_call.1} parent=95 // pred_fallthru
          _
        // Predicated region
        $region113: #{tpu_custom_call.1} parent=95 // pred_check
          %p789 = pneg %p181
        $region114: #{tpu_custom_call.1} parent=95 // pred_check_branch
          %791 = sbr.rel (%p789) target = $region116
        $region115: #{tpu_custom_call.1} parent=95 // pred_region
          %792 = dma.done [#allocation10], 16
        $region116: #{tpu_custom_call.1} parent=95 // pred_fallthru
          _
        // Predicated region
        $region117: #{tpu_custom_call.1} parent=95 // pred_check
          %p793 = pneg %p207
        $region118: #{tpu_custom_call.1} parent=95 // pred_check_branch
          %795 = sbr.rel (%p793) target = $region120
        $region119: #{tpu_custom_call.1} parent=95 // pred_region
          %796 = dma.done [#allocation13], 256
        $region120: #{tpu_custom_call.1} parent=95 // pred_fallthru
          _
        // Predicated region
        $region121: #{tpu_custom_call.1} parent=95 // pred_check
          %p797 = pneg %p233
        $region122: #{tpu_custom_call.1} parent=95 // pred_check_branch
          %799 = sbr.rel (%p797) target = $region124
        $region123: #{tpu_custom_call.1} parent=95 // pred_region
          %800 = dma.done [#allocation13], 16
        $region124: #{tpu_custom_call.1} parent=95 // pred_fallthru
          _
        // Predicated region
        $region125: #{tpu_custom_call.1} parent=95 // pred_check
          %p801 = pneg %p259
        $region126: #{tpu_custom_call.1} parent=95 // pred_check_branch
          %803 = sbr.rel (%p801) target = $region128
        $region127: #{tpu_custom_call.1} parent=95 // pred_region
          %804 = dma.done [#allocation16], 256
        $region128: #{tpu_custom_call.1} parent=95 // pred_fallthru
          _
        // Predicated region
        $region129: #{tpu_custom_call.1} parent=95 // pred_check
          %p805 = pneg %p285
        $region130: #{tpu_custom_call.1} parent=95 // pred_check_branch
          %807 = sbr.rel (%p805) target = $region132
        $region131: #{tpu_custom_call.1} parent=95 // pred_region
          %808 = dma.done [#allocation16], 16
        $region132: #{tpu_custom_call.1} parent=95 // pred_fallthru
          _
        // Predicated region
        $region133: #{tpu_custom_call.1} parent=95 // pred_check
          %p809 = pneg %p353
        $region134: #{tpu_custom_call.1} parent=95 // pred_check_branch
          %811 = sbr.rel (%p809) target = $region136
        $region135: #{tpu_custom_call.1} parent=95 // pred_region
          %812 = dma.done [#allocation19], 256
        $region136: #{tpu_custom_call.1} parent=95 // pred_fallthru
          _
        // Predicated region
        $region137: #{tpu_custom_call.1} parent=95 // pred_check
          %p813 = pneg %p437
        $region138: #{tpu_custom_call.1} parent=95 // pred_check_branch
          %815 = sbr.rel (%p813) target = $region140
        $region139: #{tpu_custom_call.1} parent=95 // pred_region
          %816 = dma.done [#allocation19], 256
        $region140: #{tpu_custom_call.1} parent=95 // pred_fallthru
          _
        // Predicated region
        $region141: #{tpu_custom_call.1} parent=95 // pred_check
          %p817 = pneg %p479
        $region142: #{tpu_custom_call.1} parent=95 // pred_check_branch
          %819 = sbr.rel (%p817) target = $region144
        $region143: #{tpu_custom_call.1} parent=95 // pred_region
          %820 = dma.done [#allocation22], 256
        $region144: #{tpu_custom_call.1} parent=95 // pred_fallthru
          _
        %s821 = sand.u32 %s64, 1
        %s822 = scalar_lea.sflag [#allocation4], %s821
        %s823 = sand.u32 %s64, 1
        %s824 = smul.addr %s823, 4
        %s825 = scalar_lea.vmem [#allocation3], %s824
        %p826 = pneg %p77
        %p827 = pneg %p74
        %s828 = sand.u32 %s44, 1
        %s829 = scalar_lea.sflag [#allocation7], %s828
        %s830 = sand.u32 %s90, 1
        %s831 = smul.addr %s830, 4
        %s832 = scalar_lea.vmem [#allocation6], %s831
        %p833 = pneg %p103
        %p834 = pneg %p100
        %s835 = sand.u32 %s44, 1
        %s836 = scalar_lea.sflag [#allocation7], %s835
        %s837 = sand.u32 %s116, 1
        %s838 = smul.addr %s837, 4
        %s839 = scalar_lea.vmem [#allocation8], %s838
        %p840 = pneg %p129
        %p841 = pneg %p126
        %p842 = pneg %p155
        %p843 = pneg %p152
        %p844 = pneg %p181
        %p845 = pneg %p178
        %p846 = pneg %p207
        %p847 = pneg %p204
        %p848 = pneg %p233
        %p849 = pneg %p230
        %p850 = pneg %p259
        %p851 = pneg %p256
        %p852 = pneg %p285
        %p853 = pneg %p282
        %p854 = scmp.lt.s32.totalorder %s49, 0
        %s855 = scalar_select %p854, %s49, 0
        %s856 = smul.addr %s855, 4
        %s857 = smul.addr %s856, 4
        %s858 = scalar_lea.vmem %s9, %s857
        %p859 = pneg %p311
        %p860 = pneg %p308
        %p861 = pneg %p332
        %p862 = pneg %p329
        %p863 = pneg %p353
        %p864 = pneg %p350
        %p865 = pneg %p374
        %p866 = pneg %p371
        %p867 = pneg %p395
        %p868 = pneg %p392
        %p869 = pneg %p416
        %p870 = pneg %p413
        %p871 = pneg %p437
        %p872 = pneg %p434
        %p873 = pneg %p458
        %p874 = pneg %p455
        %p875 = pneg %p479
        %p876 = pneg %p476
        %p877 = pneg %p500
        %p878 = pneg %p497
        %p879 = pneg %p526
        %p880 = pneg %p523
        %s881 = sand.u32 %s513, 1
        %s882 = scalar_lea.sflag [#allocation5], %s881
        %s883 = sand.u32 %s513, 1
        %s884 = smul.addr %s883, 8
        %s885 = scalar_lea.vmem [#allocation23], %s884
        %p886 = scmp.lt.s32.totalorder %s49, 0
        %s887 = scalar_select %p886, %s49, 0
        %s888 = smul.addr %s887, 4
        %s889 = smul.addr %s888, 4
        %s890 = scalar_lea.vmem %s9, %s889
        %p892 = scmp.eq.s32.totalorder %s49, 0
        // Predicated region
        $region145: #{tpu_custom_call.1} parent=95 // pred_check
          %p893 = pneg %p892
        $region146: #{tpu_custom_call.1} parent=95 // pred_check_branch
          %895 = sbr.rel (%p893) target = $region148
        $region147: #{tpu_custom_call.1} parent=95 // pred_region
          %vm896 = vcmask 261120
          %897 = vst.msk [vmem:[#allocation2] sm:$0xff] %vm896, 0.0
        $region148: #{tpu_custom_call.1} parent=95 // pred_fallthru
          _
        %v898 = vld [vmem:[%s762] sm:$0xf]
        %v899 = vld [vmem:[%s771] sm:$0xf]
        %v900 = vld [vmem:[%s780] sm:$0xf]
        %v901 = vld [vmem:[#allocation9] sm:$0xf]
        %v902 = vld [vmem:[#allocation9 + $0x4] sm:$0xf]
        %v903 = vld [vmem:[#allocation9 + $0x8] sm:$0xf]
        %v904 = vld [vmem:[#allocation9 + $0xc] sm:$0xf]
        %v905 = vld [vmem:[#allocation11] sm:$0x1]
        %v907 = vlaneseq
        %v908 = vshrl.u32 %v907, 7
        %v909 = vsub.s32 0, %v908
        %v910 = vrot.slane %v905, %v909
        %v916 = vunpack.c.l.b16 %v901
        %v917 = vunpack.c.l.b16 %v902
        %v918 = vunpack.c.l.b16 %v903
        %v919 = vunpack.c.l.b16 %v904
        %v920 = vpack.c.b16 %v917, %v916
        %v921 = vpack.c.b16 %v919, %v918
        %vm924 = vcmask 261120
        %v926 = vsel %vm924, %v898, 0
        %928 = vmatprep.subr.bf16.mxu0 0
        %929 = vmatpush1.bf16.msra.mxu0 0
        %930 = vmatprep.subr.bf16.mxu0 0
        %931 = vmatpush1.bf16.msra.mxu0 0
        %932 = vmatprep.subr.bf16.mxu0 0
        %933 = vmatpush1.bf16.msra.mxu0 0
        %934 = vmatprep.subr.bf16.mxu0 0
        %935 = vmatpush1.bf16.msra.mxu0 0
        %936 = vmatprep.subr.bf16.mxu0 0
        %937 = vmatpush1.bf16.msra.mxu0 0
        %938 = vmatprep.subr.bf16.mxu0 0
        %939 = vmatpush1.bf16.msra.mxu0 0
        %940 = vmatprep.subr.bf16.mxu0 0
        %941 = vmatpush1.bf16.msra.mxu0 %v921
        %942 = vmatprep.subr.bf16.mxu0 0
        %943 = vmatpush1.bf16.msra.mxu0 %v920
        %944 = vmatprep.subr.bf16.mxu0 0
        %945 = vmatpush2.bf16.msra.mxu0 0
        %946 = vmatprep.subr.bf16.mxu0 0
        %947 = vmatpush2.bf16.msra.mxu0 0
        %948 = vmatprep.subr.bf16.mxu0 0
        %949 = vmatpush2.bf16.msra.mxu0 0
        %950 = vmatprep.subr.bf16.mxu0 0
        %951 = vmatpush2.bf16.msra.mxu0 0
        %952 = vmatprep.subr.bf16.mxu0 0
        %953 = vmatpush2.bf16.msra.mxu0 0
        %954 = vmatprep.subr.bf16.mxu0 0
        %955 = vmatpush2.bf16.msra.mxu0 0
        %956 = vmatprep.subr.bf16.mxu0 0
        %957 = vmatpush2.bf16.msra.mxu0 0
        %958 = vmatprep.subr.bf16.mxu0 0
        %959 = vmatpush2.bf16.msra.mxu0 0
        %960 = vmatprep.mubr.bf16.mxu0 0
        %961 = vmatmul.mubr.bf16.gmra.mxu0 %v926
        %v962 = vpop.f32.mrf.mxu0
        %v963 = vadd.f32 %v910, %v962
        %v964 = vpop.f32.mrf.mxu0
        %v965 = vpop.f32.mrf.mxu0
        %v966 = vpop.f32.mrf.mxu0
        %967 = vdwg.mxu0
        %v968 = vpack.c.bf16 %v963, %v963
        %v969 = vld [vmem:[#allocation12] sm:$0xf]
        %v970 = vld [vmem:[#allocation12 + $0x4] sm:$0xf]
        %v971 = vld [vmem:[#allocation12 + $0x8] sm:$0xf]
        %v972 = vld [vmem:[#allocation12 + $0xc] sm:$0xf]
        %v973 = vld [vmem:[#allocation14] sm:$0x1]
        %v975 = vlaneseq
        %v976 = vshrl.u32 %v975, 7
        %v977 = vsub.s32 0, %v976
        %v978 = vrot.slane %v973, %v977
        %v984 = vunpack.c.l.b16 %v969
        %v985 = vunpack.c.l.b16 %v970
        %v986 = vunpack.c.l.b16 %v971
        %v987 = vunpack.c.l.b16 %v972
        %v988 = vpack.c.b16 %v985, %v984
        %v989 = vpack.c.b16 %v987, %v986
        %v993 = vsel %vm924, %v899, 0
        %995 = vmatprep.subr.bf16.mxu0 0
        %996 = vmatpush1.bf16.msra.mxu0 0
        %997 = vmatprep.subr.bf16.mxu0 0
        %998 = vmatpush1.bf16.msra.mxu0 0
        %999 = vmatprep.subr.bf16.mxu0 0
        %1000 = vmatpush1.bf16.msra.mxu0 0
        %1001 = vmatprep.subr.bf16.mxu0 0
        %1002 = vmatpush1.bf16.msra.mxu0 0
        %1003 = vmatprep.subr.bf16.mxu0 0
        %1004 = vmatpush1.bf16.msra.mxu0 0
        %1005 = vmatprep.subr.bf16.mxu0 0
        %1006 = vmatpush1.bf16.msra.mxu0 0
        %1007 = vmatprep.subr.bf16.mxu0 0
        %1008 = vmatpush1.bf16.msra.mxu0 %v989
        %1009 = vmatprep.subr.bf16.mxu0 0
        %1010 = vmatpush1.bf16.msra.mxu0 %v988
        %1011 = vmatprep.subr.bf16.mxu0 0
        %1012 = vmatpush2.bf16.msra.mxu0 0
        %1013 = vmatprep.subr.bf16.mxu0 0
        %1014 = vmatpush2.bf16.msra.mxu0 0
        %1015 = vmatprep.subr.bf16.mxu0 0
        %1016 = vmatpush2.bf16.msra.mxu0 0
        %1017 = vmatprep.subr.bf16.mxu0 0
        %1018 = vmatpush2.bf16.msra.mxu0 0
        %1019 = vmatprep.subr.bf16.mxu0 0
        %1020 = vmatpush2.bf16.msra.mxu0 0
        %1021 = vmatprep.subr.bf16.mxu0 0
        %1022 = vmatpush2.bf16.msra.mxu0 0
        %1023 = vmatprep.subr.bf16.mxu0 0
        %1024 = vmatpush2.bf16.msra.mxu0 0
        %1025 = vmatprep.subr.bf16.mxu0 0
        %1026 = vmatpush2.bf16.msra.mxu0 0
        %1027 = vmatprep.mubr.bf16.mxu0 0
        %1028 = vmatmul.mubr.bf16.gmra.mxu0 %v993
        %v1029 = vpop.f32.mrf.mxu0
        %v1030 = vadd.f32 %v978, %v1029
        %v1031 = vpop.f32.mrf.mxu0
        %v1032 = vpop.f32.mrf.mxu0
        %v1033 = vpop.f32.mrf.mxu0
        %1034 = vdwg.mxu0
        %v1035 = vpack.c.bf16 %v1030, %v1030
        %v1036 = vld [vmem:[#allocation15] sm:$0xf]
        %v1037 = vld [vmem:[#allocation15 + $0x4] sm:$0xf]
        %v1038 = vld [vmem:[#allocation15 + $0x8] sm:$0xf]
        %v1039 = vld [vmem:[#allocation15 + $0xc] sm:$0xf]
        %v1040 = vld [vmem:[#allocation17] sm:$0x1]
        %v1042 = vlaneseq
        %v1043 = vshrl.u32 %v1042, 7
        %v1044 = vsub.s32 0, %v1043
        %v1045 = vrot.slane %v1040, %v1044
        %v1051 = vunpack.c.l.b16 %v1036
        %v1052 = vunpack.c.l.b16 %v1037
        %v1053 = vunpack.c.l.b16 %v1038
        %v1054 = vunpack.c.l.b16 %v1039
        %v1055 = vpack.c.b16 %v1052, %v1051
        %v1056 = vpack.c.b16 %v1054, %v1053
        %v1060 = vsel %vm924, %v900, 0
        %1062 = vmatprep.subr.bf16.mxu0 0
        %1063 = vmatpush1.bf16.msra.mxu0 0
        %1064 = vmatprep.subr.bf16.mxu0 0
        %1065 = vmatpush1.bf16.msra.mxu0 0
        %1066 = vmatprep.subr.bf16.mxu0 0
        %1067 = vmatpush1.bf16.msra.mxu0 0
        %1068 = vmatprep.subr.bf16.mxu0 0
        %1069 = vmatpush1.bf16.msra.mxu0 0
        %1070 = vmatprep.subr.bf16.mxu0 0
        %1071 = vmatpush1.bf16.msra.mxu0 0
        %1072 = vmatprep.subr.bf16.mxu0 0
        %1073 = vmatpush1.bf16.msra.mxu0 0
        %1074 = vmatprep.subr.bf16.mxu0 0
        %1075 = vmatpush1.bf16.msra.mxu0 %v1056
        %1076 = vmatprep.subr.bf16.mxu0 0
        %1077 = vmatpush1.bf16.msra.mxu0 %v1055
        %1078 = vmatprep.subr.bf16.mxu0 0
        %1079 = vmatpush2.bf16.msra.mxu0 0
        %1080 = vmatprep.subr.bf16.mxu0 0
        %1081 = vmatpush2.bf16.msra.mxu0 0
        %1082 = vmatprep.subr.bf16.mxu0 0
        %1083 = vmatpush2.bf16.msra.mxu0 0
        %1084 = vmatprep.subr.bf16.mxu0 0
        %1085 = vmatpush2.bf16.msra.mxu0 0
        %1086 = vmatprep.subr.bf16.mxu0 0
        %1087 = vmatpush2.bf16.msra.mxu0 0
        %1088 = vmatprep.subr.bf16.mxu0 0
        %1089 = vmatpush2.bf16.msra.mxu0 0
        %1090 = vmatprep.subr.bf16.mxu0 0
        %1091 = vmatpush2.bf16.msra.mxu0 0
        %1092 = vmatprep.subr.bf16.mxu0 0
        %1093 = vmatpush2.bf16.msra.mxu0 0
        %1094 = vmatprep.mubr.bf16.mxu0 0
        %1095 = vmatmul.mubr.bf16.gmra.mxu0 %v1060
        %v1096 = vpop.f32.mrf.mxu0
        %v1097 = vadd.f32 %v1045, %v1096
        %v1098 = vpop.f32.mrf.mxu0
        %v1099 = vpop.f32.mrf.mxu0
        %v1100 = vpop.f32.mrf.mxu0
        %1101 = vdwg.mxu0
        %v1102 = vpack.c.bf16 %v1097, %v1097
        %vm1103 = vcmask 64512
        %v1105 = vsel %vm1103, %v968, 0
        %v1108 = vsel %vm1103, %v1035, 0
        %1110 = vmatprep.subr.bf16.mxu0 0
        %1111 = vmatpush1.bf16.xpose.msra.mxu0 0
        %1112 = vmatprep.subr.bf16.mxu0 0
        %1113 = vmatpush1.bf16.xpose.msra.mxu0 0
        %1114 = vmatprep.subr.bf16.mxu0 0
        %1115 = vmatpush1.bf16.xpose.msra.mxu0 0
        %1116 = vmatprep.subr.bf16.mxu0 0
        %1117 = vmatpush1.bf16.xpose.msra.mxu0 0
        %1118 = vmatprep.subr.bf16.mxu0 0
        %1119 = vmatpush1.bf16.xpose.msra.mxu0 0
        %1120 = vmatprep.subr.bf16.mxu0 0
        %1121 = vmatpush1.bf16.xpose.msra.mxu0 0
        %1122 = vmatprep.subr.bf16.mxu0 0
        %1123 = vmatpush1.bf16.xpose.msra.mxu0 0
        %1124 = vmatprep.subr.bf16.mxu0 0
        %1125 = vmatpush1.bf16.xpose.msra.mxu0 %v1108
        %1126 = vmatprep.subr.bf16.mxu0 0
        %1127 = vmatpush2.bf16.xpose.msra.mxu0 0
        %1128 = vmatprep.subr.bf16.mxu0 0
        %1129 = vmatpush2.bf16.xpose.msra.mxu0 0
        %1130 = vmatprep.subr.bf16.mxu0 0
        %1131 = vmatpush2.bf16.xpose.msra.mxu0 0
        %1132 = vmatprep.subr.bf16.mxu0 0
        %1133 = vmatpush2.bf16.xpose.msra.mxu0 0
        %1134 = vmatprep.subr.bf16.mxu0 0
        %1135 = vmatpush2.bf16.xpose.msra.mxu0 0
        %1136 = vmatprep.subr.bf16.mxu0 0
        %1137 = vmatpush2.bf16.xpose.msra.mxu0 0
        %1138 = vmatprep.subr.bf16.mxu0 0
        %1139 = vmatpush2.bf16.xpose.msra.mxu0 0
        %1140 = vmatprep.subr.bf16.mxu0 0
        %1141 = vmatpush2.bf16.xpose.msra.mxu0 0
        %1142 = vmatprep.mubr.bf16.mxu0 0
        %1143 = vmatmul.mubr.bf16.gmra.mxu0 %v1105
        %v1144 = vpop.f32.mrf.mxu0
        %v1145 = vadd.f32 0.0, %v1144
        %v1146 = vpop.f32.mrf.mxu0
        %v1147 = vpop.f32.mrf.mxu0
        %v1148 = vpop.f32.mrf.mxu0
        %1149 = vdwg.mxu0
        %v1150 = vsel %vm1103, %v1145, -inf
        %1151 = vmax.xlane.f32.xlu0 %v1150
        %v1152 = vpop.xlane.xlu0 %1151
        %v1153 = vsub.f32 %v1145, %v1152
        %v1154 = vmul.f32 %v1153, 1.442695
        %v1155 = vpow.pop %v1154
        %v1156 = vsel %vm1103, %v1155, 0.0
        %1157 = vadd.xlane.f32.xlu0 %v1156
        %v1158 = vpop.xlane.xlu0 %1157
        %v1159 = vrcp.pop %v1158
        %v1160 = vmul.f32 %v1155, %v1159
        %v1161 = vpack.c.bf16 %v1160, %v1160
        %v1163 = vsel %vm1103, %v1161, 0
        %vm1165 = vcmask 1043456
        %v1167 = vsel %vm1165, %v1102, 0
        %1169 = vmatprep.subr.bf16.mxu0 0
        %1170 = vmatpush1.bf16.msra.mxu0 0
        %1171 = vmatprep.subr.bf16.mxu0 0
        %1172 = vmatpush1.bf16.msra.mxu0 0
        %1173 = vmatprep.subr.bf16.mxu0 0
        %1174 = vmatpush1.bf16.msra.mxu0 0
        %1175 = vmatprep.subr.bf16.mxu0 0
        %1176 = vmatpush1.bf16.msra.mxu0 0
        %1177 = vmatprep.subr.bf16.mxu0 0
        %1178 = vmatpush1.bf16.msra.mxu0 0
        %1179 = vmatprep.subr.bf16.mxu0 0
        %1180 = vmatpush1.bf16.msra.mxu0 0
        %1181 = vmatprep.subr.bf16.mxu0 0
        %1182 = vmatpush1.bf16.msra.mxu0 0
        %1183 = vmatprep.subr.bf16.mxu0 0
        %1184 = vmatpush1.bf16.msra.mxu0 %v1167
        %1185 = vmatprep.subr.bf16.mxu0 0
        %1186 = vmatpush2.bf16.msra.mxu0 0
        %1187 = vmatprep.subr.bf16.mxu0 0
        %1188 = vmatpush2.bf16.msra.mxu0 0
        %1189 = vmatprep.subr.bf16.mxu0 0
        %1190 = vmatpush2.bf16.msra.mxu0 0
        %1191 = vmatprep.subr.bf16.mxu0 0
        %1192 = vmatpush2.bf16.msra.mxu0 0
        %1193 = vmatprep.subr.bf16.mxu0 0
        %1194 = vmatpush2.bf16.msra.mxu0 0
        %1195 = vmatprep.subr.bf16.mxu0 0
        %1196 = vmatpush2.bf16.msra.mxu0 0
        %1197 = vmatprep.subr.bf16.mxu0 0
        %1198 = vmatpush2.bf16.msra.mxu0 0
        %1199 = vmatprep.subr.bf16.mxu0 0
        %1200 = vmatpush2.bf16.msra.mxu0 0
        %1201 = vmatprep.mubr.bf16.mxu0 0
        %1202 = vmatmul.mubr.bf16.gmra.mxu0 %v1163
        %v1203 = vpop.f32.mrf.mxu0
        %v1204 = vadd.f32 0.0, %v1203
        %v1205 = vpop.f32.mrf.mxu0
        %v1206 = vpop.f32.mrf.mxu0
        %v1207 = vpop.f32.mrf.mxu0
        %1208 = vdwg.mxu0
        %1210 = vrot.lane.b32.xlu0 %v968, 120
        %v1211 = vpop.permute.xlu0 %1210
        %1213 = vrot.lane.b32.xlu0 %v1035, 120
        %v1214 = vpop.permute.xlu0 %1213
        %v1216 = vsel %vm1103, %v1211, 0
        %v1219 = vsel %vm1103, %v1214, 0
        %1221 = vmatprep.subr.bf16.mxu0 0
        %1222 = vmatpush1.bf16.xpose.msra.mxu0 0
        %1223 = vmatprep.subr.bf16.mxu0 0
        %1224 = vmatpush1.bf16.xpose.msra.mxu0 0
        %1225 = vmatprep.subr.bf16.mxu0 0
        %1226 = vmatpush1.bf16.xpose.msra.mxu0 0
        %1227 = vmatprep.subr.bf16.mxu0 0
        %1228 = vmatpush1.bf16.xpose.msra.mxu0 0
        %1229 = vmatprep.subr.bf16.mxu0 0
        %1230 = vmatpush1.bf16.xpose.msra.mxu0 0
        %1231 = vmatprep.subr.bf16.mxu0 0
        %1232 = vmatpush1.bf16.xpose.msra.mxu0 0
        %1233 = vmatprep.subr.bf16.mxu0 0
        %1234 = vmatpush1.bf16.xpose.msra.mxu0 0
        %1235 = vmatprep.subr.bf16.mxu0 0
        %1236 = vmatpush1.bf16.xpose.msra.mxu0 %v1219
        %1237 = vmatprep.subr.bf16.mxu0 0
        %1238 = vmatpush2.bf16.xpose.msra.mxu0 0
        %1239 = vmatprep.subr.bf16.mxu0 0
        %1240 = vmatpush2.bf16.xpose.msra.mxu0 0
        %1241 = vmatprep.subr.bf16.mxu0 0
        %1242 = vmatpush2.bf16.xpose.msra.mxu0 0
        %1243 = vmatprep.subr.bf16.mxu0 0
        %1244 = vmatpush2.bf16.xpose.msra.mxu0 0
        %1245 = vmatprep.subr.bf16.mxu0 0
        %1246 = vmatpush2.bf16.xpose.msra.mxu0 0
        %1247 = vmatprep.subr.bf16.mxu0 0
        %1248 = vmatpush2.bf16.xpose.msra.mxu0 0
        %1249 = vmatprep.subr.bf16.mxu0 0
        %1250 = vmatpush2.bf16.xpose.msra.mxu0 0
        %1251 = vmatprep.subr.bf16.mxu0 0
        %1252 = vmatpush2.bf16.xpose.msra.mxu0 0
        %1253 = vmatprep.mubr.bf16.mxu0 0
        %1254 = vmatmul.mubr.bf16.gmra.mxu0 %v1216
        %v1255 = vpop.f32.mrf.mxu0
        %v1256 = vadd.f32 0.0, %v1255
        %v1257 = vpop.f32.mrf.mxu0
        %v1258 = vpop.f32.mrf.mxu0
        %v1259 = vpop.f32.mrf.mxu0
        %1260 = vdwg.mxu0
        %v1261 = vsel %vm1103, %v1256, -inf
        %1262 = vmax.xlane.f32.xlu0 %v1261
        %v1263 = vpop.xlane.xlu0 %1262
        %v1264 = vsub.f32 %v1256, %v1263
        %v1265 = vmul.f32 %v1264, 1.442695
        %v1266 = vpow.pop %v1265
        %v1267 = vsel %vm1103, %v1266, 0.0
        %1268 = vadd.xlane.f32.xlu0 %v1267
        %v1269 = vpop.xlane.xlu0 %1268
        %v1270 = vrcp.pop %v1269
        %v1271 = vmul.f32 %v1266, %v1270
        %v1272 = vpack.c.bf16 %v1271, %v1271
        %1274 = vrot.lane.b32.xlu0 %v1102, 120
        %v1275 = vpop.permute.xlu0 %1274
        %v1277 = vsel %vm1103, %v1272, 0
        %v1280 = vsel %vm1165, %v1275, 0
        %1282 = vmatprep.subr.bf16.mxu0 0
        %1283 = vmatpush1.bf16.msra.mxu0 0
        %1284 = vmatprep.subr.bf16.mxu0 0
        %1285 = vmatpush1.bf16.msra.mxu0 0
        %1286 = vmatprep.subr.bf16.mxu0 0
        %1287 = vmatpush1.bf16.msra.mxu0 0
        %1288 = vmatprep.subr.bf16.mxu0 0
        %1289 = vmatpush1.bf16.msra.mxu0 0
        %1290 = vmatprep.subr.bf16.mxu0 0
        %1291 = vmatpush1.bf16.msra.mxu0 0
        %1292 = vmatprep.subr.bf16.mxu0 0
        %1293 = vmatpush1.bf16.msra.mxu0 0
        %1294 = vmatprep.subr.bf16.mxu0 0
        %1295 = vmatpush1.bf16.msra.mxu0 0
        %1296 = vmatprep.subr.bf16.mxu0 0
        %1297 = vmatpush1.bf16.msra.mxu0 %v1280
        %1298 = vmatprep.subr.bf16.mxu0 0
        %1299 = vmatpush2.bf16.msra.mxu0 0
        %1300 = vmatprep.subr.bf16.mxu0 0
        %1301 = vmatpush2.bf16.msra.mxu0 0
        %1302 = vmatprep.subr.bf16.mxu0 0
        %1303 = vmatpush2.bf16.msra.mxu0 0
        %1304 = vmatprep.subr.bf16.mxu0 0
        %1305 = vmatpush2.bf16.msra.mxu0 0
        %1306 = vmatprep.subr.bf16.mxu0 0
        %1307 = vmatpush2.bf16.msra.mxu0 0
        %1308 = vmatprep.subr.bf16.mxu0 0
        %1309 = vmatpush2.bf16.msra.mxu0 0
        %1310 = vmatprep.subr.bf16.mxu0 0
        %1311 = vmatpush2.bf16.msra.mxu0 0
        %1312 = vmatprep.subr.bf16.mxu0 0
        %1313 = vmatpush2.bf16.msra.mxu0 0
        %1314 = vmatprep.mubr.bf16.mxu0 0
        %1315 = vmatmul.mubr.bf16.gmra.mxu0 %v1277
        %v1316 = vpop.f32.mrf.mxu0
        %v1317 = vadd.f32 0.0, %v1316
        %v1318 = vpop.f32.mrf.mxu0
        %v1319 = vpop.f32.mrf.mxu0
        %v1320 = vpop.f32.mrf.mxu0
        %1321 = vdwg.mxu0
        %1322 = vrot.lane.b32.xlu0 %v968, 112
        %v1323 = vpop.permute.xlu0 %1322
        %1324 = vrot.lane.b32.xlu0 %v1035, 112
        %v1325 = vpop.permute.xlu0 %1324
        %v1327 = vsel %vm1103, %v1323, 0
        %v1330 = vsel %vm1103, %v1325, 0
        %1332 = vmatprep.subr.bf16.mxu0 0
        %1333 = vmatpush1.bf16.xpose.msra.mxu0 0
        %1334 = vmatprep.subr.bf16.mxu0 0
        %1335 = vmatpush1.bf16.xpose.msra.mxu0 0
        %1336 = vmatprep.subr.bf16.mxu0 0
        %1337 = vmatpush1.bf16.xpose.msra.mxu0 0
        %1338 = vmatprep.subr.bf16.mxu0 0
        %1339 = vmatpush1.bf16.xpose.msra.mxu0 0
        %1340 = vmatprep.subr.bf16.mxu0 0
        %1341 = vmatpush1.bf16.xpose.msra.mxu0 0
        %1342 = vmatprep.subr.bf16.mxu0 0
        %1343 = vmatpush1.bf16.xpose.msra.mxu0 0
        %1344 = vmatprep.subr.bf16.mxu0 0
        %1345 = vmatpush1.bf16.xpose.msra.mxu0 0
        %1346 = vmatprep.subr.bf16.mxu0 0
        %1347 = vmatpush1.bf16.xpose.msra.mxu0 %v1330
        %1348 = vmatprep.subr.bf16.mxu0 0
        %1349 = vmatpush2.bf16.xpose.msra.mxu0 0
        %1350 = vmatprep.subr.bf16.mxu0 0
        %1351 = vmatpush2.bf16.xpose.msra.mxu0 0
        %1352 = vmatprep.subr.bf16.mxu0 0
        %1353 = vmatpush2.bf16.xpose.msra.mxu0 0
        %1354 = vmatprep.subr.bf16.mxu0 0
        %1355 = vmatpush2.bf16.xpose.msra.mxu0 0
        %1356 = vmatprep.subr.bf16.mxu0 0
        %1357 = vmatpush2.bf16.xpose.msra.mxu0 0
        %1358 = vmatprep.subr.bf16.mxu0 0
        %1359 = vmatpush2.bf16.xpose.msra.mxu0 0
        %1360 = vmatprep.subr.bf16.mxu0 0
        %1361 = vmatpush2.bf16.xpose.msra.mxu0 0
        %1362 = vmatprep.subr.bf16.mxu0 0
        %1363 = vmatpush2.bf16.xpose.msra.mxu0 0
        %1364 = vmatprep.mubr.bf16.mxu0 0
        %1365 = vmatmul.mubr.bf16.gmra.mxu0 %v1327
        %v1366 = vpop.f32.mrf.mxu0
        %v1367 = vadd.f32 0.0, %v1366
        %v1368 = vpop.f32.mrf.mxu0
        %v1369 = vpop.f32.mrf.mxu0
        %v1370 = vpop.f32.mrf.mxu0
        %1371 = vdwg.mxu0
        %v1372 = vsel %vm1103, %v1367, -inf
        %1373 = vmax.xlane.f32.xlu0 %v1372
        %v1374 = vpop.xlane.xlu0 %1373
        %v1375 = vsub.f32 %v1367, %v1374
        %v1376 = vmul.f32 %v1375, 1.442695
        %v1377 = vpow.pop %v1376
        %v1378 = vsel %vm1103, %v1377, 0.0
        %1379 = vadd.xlane.f32.xlu0 %v1378
        %v1380 = vpop.xlane.xlu0 %1379
        %v1381 = vrcp.pop %v1380
        %v1382 = vmul.f32 %v1377, %v1381
        %v1383 = vpack.c.bf16 %v1382, %v1382
        %1384 = vrot.lane.b32.xlu0 %v1102, 112
        %v1385 = vpop.permute.xlu0 %1384
        %v1387 = vsel %vm1103, %v1383, 0
        %v1390 = vsel %vm1165, %v1385, 0
        %1392 = vmatprep.subr.bf16.mxu0 0
        %1393 = vmatpush1.bf16.msra.mxu0 0
        %1394 = vmatprep.subr.bf16.mxu0 0
        %1395 = vmatpush1.bf16.msra.mxu0 0
        %1396 = vmatprep.subr.bf16.mxu0 0
        %1397 = vmatpush1.bf16.msra.mxu0 0
        %1398 = vmatprep.subr.bf16.mxu0 0
        %1399 = vmatpush1.bf16.msra.mxu0 0
        %1400 = vmatprep.subr.bf16.mxu0 0
        %1401 = vmatpush1.bf16.msra.mxu0 0
        %1402 = vmatprep.subr.bf16.mxu0 0
        %1403 = vmatpush1.bf16.msra.mxu0 0
        %1404 = vmatprep.subr.bf16.mxu0 0
        %1405 = vmatpush1.bf16.msra.mxu0 0
        %1406 = vmatprep.subr.bf16.mxu0 0
        %1407 = vmatpush1.bf16.msra.mxu0 %v1390
        %1408 = vmatprep.subr.bf16.mxu0 0
        %1409 = vmatpush2.bf16.msra.mxu0 0
        %1410 = vmatprep.subr.bf16.mxu0 0
        %1411 = vmatpush2.bf16.msra.mxu0 0
        %1412 = vmatprep.subr.bf16.mxu0 0
        %1413 = vmatpush2.bf16.msra.mxu0 0
        %1414 = vmatprep.subr.bf16.mxu0 0
        %1415 = vmatpush2.bf16.msra.mxu0 0
        %1416 = vmatprep.subr.bf16.mxu0 0
        %1417 = vmatpush2.bf16.msra.mxu0 0
        %1418 = vmatprep.subr.bf16.mxu0 0
        %1419 = vmatpush2.bf16.msra.mxu0 0
        %1420 = vmatprep.subr.bf16.mxu0 0
        %1421 = vmatpush2.bf16.msra.mxu0 0
        %1422 = vmatprep.subr.bf16.mxu0 0
        %1423 = vmatpush2.bf16.msra.mxu0 0
        %1424 = vmatprep.mubr.bf16.mxu0 0
        %1425 = vmatmul.mubr.bf16.gmra.mxu0 %v1387
        %v1426 = vpop.f32.mrf.mxu0
        %v1427 = vadd.f32 0.0, %v1426
        %v1428 = vpop.f32.mrf.mxu0
        %v1429 = vpop.f32.mrf.mxu0
        %v1430 = vpop.f32.mrf.mxu0
        %1431 = vdwg.mxu0
        %1432 = vrot.lane.b32.xlu0 %v968, 104
        %v1433 = vpop.permute.xlu0 %1432
        %1434 = vrot.lane.b32.xlu0 %v1035, 104
        %v1435 = vpop.permute.xlu0 %1434
        %v1437 = vsel %vm1103, %v1433, 0
        %v1440 = vsel %vm1103, %v1435, 0
        %1442 = vmatprep.subr.bf16.mxu0 0
        %1443 = vmatpush1.bf16.xpose.msra.mxu0 0
        %1444 = vmatprep.subr.bf16.mxu0 0
        %1445 = vmatpush1.bf16.xpose.msra.mxu0 0
        %1446 = vmatprep.subr.bf16.mxu0 0
        %1447 = vmatpush1.bf16.xpose.msra.mxu0 0
        %1448 = vmatprep.subr.bf16.mxu0 0
        %1449 = vmatpush1.bf16.xpose.msra.mxu0 0
        %1450 = vmatprep.subr.bf16.mxu0 0
        %1451 = vmatpush1.bf16.xpose.msra.mxu0 0
        %1452 = vmatprep.subr.bf16.mxu0 0
        %1453 = vmatpush1.bf16.xpose.msra.mxu0 0
        %1454 = vmatprep.subr.bf16.mxu0 0
        %1455 = vmatpush1.bf16.xpose.msra.mxu0 0
        %1456 = vmatprep.subr.bf16.mxu0 0
        %1457 = vmatpush1.bf16.xpose.msra.mxu0 %v1440
        %1458 = vmatprep.subr.bf16.mxu0 0
        %1459 = vmatpush2.bf16.xpose.msra.mxu0 0
        %1460 = vmatprep.subr.bf16.mxu0 0
        %1461 = vmatpush2.bf16.xpose.msra.mxu0 0
        %1462 = vmatprep.subr.bf16.mxu0 0
        %1463 = vmatpush2.bf16.xpose.msra.mxu0 0
        %1464 = vmatprep.subr.bf16.mxu0 0
        %1465 = vmatpush2.bf16.xpose.msra.mxu0 0
        %1466 = vmatprep.subr.bf16.mxu0 0
        %1467 = vmatpush2.bf16.xpose.msra.mxu0 0
        %1468 = vmatprep.subr.bf16.mxu0 0
        %1469 = vmatpush2.bf16.xpose.msra.mxu0 0
        %1470 = vmatprep.subr.bf16.mxu0 0
        %1471 = vmatpush2.bf16.xpose.msra.mxu0 0
        %1472 = vmatprep.subr.bf16.mxu0 0
        %1473 = vmatpush2.bf16.xpose.msra.mxu0 0
        %1474 = vmatprep.mubr.bf16.mxu0 0
        %1475 = vmatmul.mubr.bf16.gmra.mxu0 %v1437
        %v1476 = vpop.f32.mrf.mxu0
        %v1477 = vadd.f32 0.0, %v1476
        %v1478 = vpop.f32.mrf.mxu0
        %v1479 = vpop.f32.mrf.mxu0
        %v1480 = vpop.f32.mrf.mxu0
        %1481 = vdwg.mxu0
        %v1482 = vsel %vm1103, %v1477, -inf
        %1483 = vmax.xlane.f32.xlu0 %v1482
        %v1484 = vpop.xlane.xlu0 %1483
        %v1485 = vsub.f32 %v1477, %v1484
        %v1486 = vmul.f32 %v1485, 1.442695
        %v1487 = vpow.pop %v1486
        %v1488 = vsel %vm1103, %v1487, 0.0
        %1489 = vadd.xlane.f32.xlu0 %v1488
        %v1490 = vpop.xlane.xlu0 %1489
        %v1491 = vrcp.pop %v1490
        %v1492 = vmul.f32 %v1487, %v1491
        %v1493 = vpack.c.bf16 %v1492, %v1492
        %1494 = vrot.lane.b32.xlu0 %v1102, 104
        %v1495 = vpop.permute.xlu0 %1494
        %v1497 = vsel %vm1103, %v1493, 0
        %v1500 = vsel %vm1165, %v1495, 0
        %1502 = vmatprep.subr.bf16.mxu0 0
        %1503 = vmatpush1.bf16.msra.mxu0 0
        %1504 = vmatprep.subr.bf16.mxu0 0
        %1505 = vmatpush1.bf16.msra.mxu0 0
        %1506 = vmatprep.subr.bf16.mxu0 0
        %1507 = vmatpush1.bf16.msra.mxu0 0
        %1508 = vmatprep.subr.bf16.mxu0 0
        %1509 = vmatpush1.bf16.msra.mxu0 0
        %1510 = vmatprep.subr.bf16.mxu0 0
        %1511 = vmatpush1.bf16.msra.mxu0 0
        %1512 = vmatprep.subr.bf16.mxu0 0
        %1513 = vmatpush1.bf16.msra.mxu0 0
        %1514 = vmatprep.subr.bf16.mxu0 0
        %1515 = vmatpush1.bf16.msra.mxu0 0
        %1516 = vmatprep.subr.bf16.mxu0 0
        %1517 = vmatpush1.bf16.msra.mxu0 %v1500
        %1518 = vmatprep.subr.bf16.mxu0 0
        %1519 = vmatpush2.bf16.msra.mxu0 0
        %1520 = vmatprep.subr.bf16.mxu0 0
        %1521 = vmatpush2.bf16.msra.mxu0 0
        %1522 = vmatprep.subr.bf16.mxu0 0
        %1523 = vmatpush2.bf16.msra.mxu0 0
        %1524 = vmatprep.subr.bf16.mxu0 0
        %1525 = vmatpush2.bf16.msra.mxu0 0
        %1526 = vmatprep.subr.bf16.mxu0 0
        %1527 = vmatpush2.bf16.msra.mxu0 0
        %1528 = vmatprep.subr.bf16.mxu0 0
        %1529 = vmatpush2.bf16.msra.mxu0 0
        %1530 = vmatprep.subr.bf16.mxu0 0
        %1531 = vmatpush2.bf16.msra.mxu0 0
        %1532 = vmatprep.subr.bf16.mxu0 0
        %1533 = vmatpush2.bf16.msra.mxu0 0
        %1534 = vmatprep.mubr.bf16.mxu0 0
        %1535 = vmatmul.mubr.bf16.gmra.mxu0 %v1497
        %v1536 = vpop.f32.mrf.mxu0
        %v1537 = vadd.f32 0.0, %v1536
        %v1538 = vpop.f32.mrf.mxu0
        %v1539 = vpop.f32.mrf.mxu0
        %v1540 = vpop.f32.mrf.mxu0
        %1541 = vdwg.mxu0
        %1543 = vrot.lane.b32.xlu0 %v1317, 8
        %v1544 = vpop.permute.xlu0 %1543
        %1547 = vrot.lane.b32.xlu0 %v1427, 16
        %v1548 = vpop.permute.xlu0 %1547
        %1551 = vrot.lane.b32.xlu0 %v1537, 24
        %v1552 = vpop.permute.xlu0 %1551
        %v1554 = vsel %vm1103, %v1204, %v1544
        %vm1555 = vcmask 130048
        %v1556 = vsel %vm1555, %v1554, %v1548
        %vm1557 = vcmask 195584
        %v1558 = vsel %vm1557, %v1556, %v1552
        %v1559 = vld [vmem:[#allocation2] sm:$0xff]
        %v1560 = vpack.c.bf16 %v1558, %v1558
        %v1561 = vld [vmem:[%s890] sm:$0xf]
        %v1562 = vld [vmem:[%s890 + $0x4] sm:$0xf]
        %v1563 = vld [vmem:[%s890 + $0x8] sm:$0xf]
        %v1564 = vld [vmem:[%s890 + $0xc] sm:$0xf]
        %v1569 = vunpack.c.l.b16 %v1561
        %v1570 = vunpack.c.l.b16 %v1562
        %v1571 = vunpack.c.l.b16 %v1563
        %v1572 = vunpack.c.l.b16 %v1564
        %v1573 = vpack.c.b16 %v1570, %v1569
        %v1574 = vpack.c.b16 %v1572, %v1571
        %v1578 = vsel %vm924, %v1560, 0
        %1580 = vmatprep.subr.bf16.mxu0 0
        %1581 = vmatpush1.bf16.msra.mxu0 0
        %1582 = vmatprep.subr.bf16.mxu0 0
        %1583 = vmatpush1.bf16.msra.mxu0 0
        %1584 = vmatprep.subr.bf16.mxu0 0
        %1585 = vmatpush1.bf16.msra.mxu0 0
        %1586 = vmatprep.subr.bf16.mxu0 0
        %1587 = vmatpush1.bf16.msra.mxu0 0
        %1588 = vmatprep.subr.bf16.mxu0 0
        %1589 = vmatpush1.bf16.msra.mxu0 0
        %1590 = vmatprep.subr.bf16.mxu0 0
        %1591 = vmatpush1.bf16.msra.mxu0 0
        %1592 = vmatprep.subr.bf16.mxu0 0
        %1593 = vmatpush1.bf16.msra.mxu0 %v1574
        %1594 = vmatprep.subr.bf16.mxu0 0
        %1595 = vmatpush1.bf16.msra.mxu0 %v1573
        %1596 = vmatprep.subr.bf16.mxu0 0
        %1597 = vmatpush2.bf16.msra.mxu0 0
        %1598 = vmatprep.subr.bf16.mxu0 0
        %1599 = vmatpush2.bf16.msra.mxu0 0
        %1600 = vmatprep.subr.bf16.mxu0 0
        %1601 = vmatpush2.bf16.msra.mxu0 0
        %1602 = vmatprep.subr.bf16.mxu0 0
        %1603 = vmatpush2.bf16.msra.mxu0 0
        %1604 = vmatprep.subr.bf16.mxu0 0
        %1605 = vmatpush2.bf16.msra.mxu0 0
        %1606 = vmatprep.subr.bf16.mxu0 0
        %1607 = vmatpush2.bf16.msra.mxu0 0
        %1608 = vmatprep.subr.bf16.mxu0 0
        %1609 = vmatpush2.bf16.msra.mxu0 0
        %1610 = vmatprep.subr.bf16.mxu0 0
        %1611 = vmatpush2.bf16.msra.mxu0 0
        %1612 = vmatprep.mubr.bf16.mxu0 0
        %1613 = vmatmul.mubr.bf16.gmra.mxu0 %v1578
        %v1614 = vpop.f32.mrf.mxu0
        %v1615 = vadd.f32 0.0, %v1614
        %v1616 = vpop.f32.mrf.mxu0
        %v1617 = vpop.f32.mrf.mxu0
        %v1618 = vpop.f32.mrf.mxu0
        %1619 = vdwg.mxu0
        %v1620 = vadd.f32 %v1559, %v1615
        %1621 = vst.msk [vmem:[#allocation2] sm:$0xff] %vm924, %v1620
        // Predicated region
        $region149: #{tpu_custom_call.1} parent=95 // pred_check
          %p1622 = pneg %p892
        $region150: #{tpu_custom_call.1} parent=95 // pred_check_branch
          %1624 = sbr.rel (%p1622) target = $region152
        $region151: #{tpu_custom_call.1} parent=95 // pred_region
          %v1625 = vld [vmem:[#allocation2] sm:$0xff]
          %v1626 = vld [vmem:[%s10] sm:$0x1]
          %v1628 = vlaneseq
          %v1629 = vshrl.u32 %v1628, 7
          %v1630 = vsub.s32 0, %v1629
          %v1631 = vrot.slane %v1626, %v1630
          %v1633 = vadd.f32 %v1625, %v1631
          %v1634 = vpack.c.bf16 %v1633, %v1633
          %v1635 = vld [vmem:[#allocation18] sm:$0xf]
          %v1636 = vld [vmem:[#allocation18 + $0x4] sm:$0xf]
          %v1637 = vld [vmem:[#allocation18 + $0x8] sm:$0xf]
          %v1638 = vld [vmem:[#allocation18 + $0xc] sm:$0xf]
          %v1639 = vld [vmem:[%s12] sm:$0x1]
          %v1641 = vlaneseq
          %v1642 = vshrl.u32 %v1641, 7
          %v1643 = vsub.s32 0, %v1642
          %v1644 = vrot.slane %v1639, %v1643
          %v1650 = vunpack.c.l.b16 %v1635
          %v1651 = vunpack.c.l.b16 %v1636
          %v1652 = vunpack.c.l.b16 %v1637
          %v1653 = vunpack.c.l.b16 %v1638
          %v1654 = vpack.c.b16 %v1651, %v1650
          %v1655 = vpack.c.b16 %v1653, %v1652
          %v1659 = vsel %vm924, %v1634, 0
          %1661 = vmatprep.subr.bf16.mxu0 0
          %1662 = vmatpush1.bf16.msra.mxu0 0
          %1663 = vmatprep.subr.bf16.mxu0 0
          %1664 = vmatpush1.bf16.msra.mxu0 0
          %1665 = vmatprep.subr.bf16.mxu0 0
          %1666 = vmatpush1.bf16.msra.mxu0 0
          %1667 = vmatprep.subr.bf16.mxu0 0
          %1668 = vmatpush1.bf16.msra.mxu0 0
          %1669 = vmatprep.subr.bf16.mxu0 0
          %1670 = vmatpush1.bf16.msra.mxu0 0
          %1671 = vmatprep.subr.bf16.mxu0 0
          %1672 = vmatpush1.bf16.msra.mxu0 0
          %1673 = vmatprep.subr.bf16.mxu0 0
          %1674 = vmatpush1.bf16.msra.mxu0 %v1655
          %1675 = vmatprep.subr.bf16.mxu0 0
          %1676 = vmatpush1.bf16.msra.mxu0 %v1654
          %1677 = vmatprep.subr.bf16.mxu0 0
          %1678 = vmatpush2.bf16.msra.mxu0 0
          %1679 = vmatprep.subr.bf16.mxu0 0
          %1680 = vmatpush2.bf16.msra.mxu0 0
          %1681 = vmatprep.subr.bf16.mxu0 0
          %1682 = vmatpush2.bf16.msra.mxu0 0
          %1683 = vmatprep.subr.bf16.mxu0 0
          %1684 = vmatpush2.bf16.msra.mxu0 0
          %1685 = vmatprep.subr.bf16.mxu0 0
          %1686 = vmatpush2.bf16.msra.mxu0 0
          %1687 = vmatprep.subr.bf16.mxu0 0
          %1688 = vmatpush2.bf16.msra.mxu0 0
          %1689 = vmatprep.subr.bf16.mxu0 0
          %1690 = vmatpush2.bf16.msra.mxu0 0
          %1691 = vmatprep.subr.bf16.mxu0 0
          %1692 = vmatpush2.bf16.msra.mxu0 0
          %1693 = vmatprep.mubr.bf16.mxu0 0
          %1694 = vmatmul.mubr.bf16.gmra.mxu0 %v1659
          %v1695 = vpop.f32.mrf.mxu0
          %v1696 = vadd.f32 %v1644, %v1695
          %v1697 = vpop.f32.mrf.mxu0
          %v1698 = vpop.f32.mrf.mxu0
          %v1699 = vpop.f32.mrf.mxu0
          %1700 = vdwg.mxu0
          %v1701 = vsel %vm924, %v1696, 0.0
          %1702 = vadd.xlane.f32.xlu0 %v1701
          %v1703 = vpop.xlane.xlu0 %1702
          %v1704 = vrcp.pop 32.0
          %v1705 = vmul.f32 %v1703, %v1704
          %v1706 = vsub.f32 %v1696, %v1705
          %v1707 = vmul.f32 %v1706, %v1706
          %v1708 = vsel %vm924, %v1707, 0.0
          %1709 = vadd.xlane.f32.xlu0 %v1708
          %v1710 = vpop.xlane.xlu0 %1709
          %v1711 = vmul.f32 %v1710, %v1704
          %v1712 = vadd.f32 %v1711, 1e-05
          %v1713 = vrsqrt.pop %v1712
          %v1714 = vmul.f32 %v1706, %v1713
          %v1715 = vld [vmem:[%s13] sm:$0x1]
          %v1717 = vlaneseq
          %v1718 = vshrl.u32 %v1717, 7
          %v1719 = vsub.s32 0, %v1718
          %v1720 = vrot.slane %v1715, %v1719
          %v1722 = vmul.f32 %v1714, %v1720
          %v1723 = vld [vmem:[%s14] sm:$0x1]
          %v1725 = vlaneseq
          %v1726 = vshrl.u32 %v1725, 7
          %v1727 = vsub.s32 0, %v1726
          %v1728 = vrot.slane %v1723, %v1727
          %v1730 = vadd.f32 %v1722, %v1728
          %v1731 = vpack.c.bf16 %v1730, %v1730
          %v1732 = vld [vmem:[#allocation20] sm:$0xf]
          %v1733 = vld [vmem:[#allocation20 + $0x4] sm:$0xf]
          %v1734 = vld [vmem:[#allocation20 + $0x8] sm:$0xf]
          %v1735 = vld [vmem:[#allocation20 + $0xc] sm:$0xf]
          %v1736 = vld [vmem:[%s16] sm:$0x1]
          %v1738 = vlaneseq
          %v1739 = vshrl.u32 %v1738, 7
          %v1740 = vsub.s32 0, %v1739
          %v1741 = vrot.slane %v1736, %v1740
          %v1747 = vunpack.c.l.b16 %v1732
          %v1748 = vunpack.c.l.b16 %v1733
          %v1749 = vunpack.c.l.b16 %v1734
          %v1750 = vunpack.c.l.b16 %v1735
          %v1751 = vpack.c.b16 %v1748, %v1747
          %v1752 = vpack.c.b16 %v1750, %v1749
          %v1756 = vsel %vm924, %v1731, 0
          %1758 = vmatprep.subr.bf16.mxu0 0
          %1759 = vmatpush1.bf16.msra.mxu0 0
          %1760 = vmatprep.subr.bf16.mxu0 0
          %1761 = vmatpush1.bf16.msra.mxu0 0
          %1762 = vmatprep.subr.bf16.mxu0 0
          %1763 = vmatpush1.bf16.msra.mxu0 0
          %1764 = vmatprep.subr.bf16.mxu0 0
          %1765 = vmatpush1.bf16.msra.mxu0 0
          %1766 = vmatprep.subr.bf16.mxu0 0
          %1767 = vmatpush1.bf16.msra.mxu0 0
          %1768 = vmatprep.subr.bf16.mxu0 0
          %1769 = vmatpush1.bf16.msra.mxu0 0
          %1770 = vmatprep.subr.bf16.mxu0 0
          %1771 = vmatpush1.bf16.msra.mxu0 %v1752
          %1772 = vmatprep.subr.bf16.mxu0 0
          %1773 = vmatpush1.bf16.msra.mxu0 %v1751
          %1774 = vmatprep.subr.bf16.mxu0 0
          %1775 = vmatpush2.bf16.msra.mxu0 0
          %1776 = vmatprep.subr.bf16.mxu0 0
          %1777 = vmatpush2.bf16.msra.mxu0 0
          %1778 = vmatprep.subr.bf16.mxu0 0
          %1779 = vmatpush2.bf16.msra.mxu0 0
          %1780 = vmatprep.subr.bf16.mxu0 0
          %1781 = vmatpush2.bf16.msra.mxu0 0
          %1782 = vmatprep.subr.bf16.mxu0 0
          %1783 = vmatpush2.bf16.msra.mxu0 0
          %1784 = vmatprep.subr.bf16.mxu0 0
          %1785 = vmatpush2.bf16.msra.mxu0 0
          %1786 = vmatprep.subr.bf16.mxu0 0
          %1787 = vmatpush2.bf16.msra.mxu0 0
          %1788 = vmatprep.subr.bf16.mxu0 0
          %1789 = vmatpush2.bf16.msra.mxu0 0
          %1790 = vmatprep.mubr.bf16.mxu0 0
          %1791 = vmatmul.mubr.bf16.gmra.mxu0 %v1756
          %v1792 = vpop.f32.mrf.mxu0
          %v1793 = vadd.f32 %v1741, %v1792
          %v1794 = vpop.f32.mrf.mxu0
          %v1795 = vpop.f32.mrf.mxu0
          %v1796 = vpop.f32.mrf.mxu0
          %1797 = vdwg.mxu0
          %v1798 = vmax.f32 %v1793, 0.0
          %v1799 = vpack.c.bf16 %v1798, %v1798
          %v1800 = vld [vmem:[#allocation21] sm:$0xf]
          %v1801 = vld [vmem:[#allocation21 + $0x4] sm:$0xf]
          %v1802 = vld [vmem:[#allocation21 + $0x8] sm:$0xf]
          %v1803 = vld [vmem:[#allocation21 + $0xc] sm:$0xf]
          %v1804 = vld [vmem:[%s18] sm:$0x1]
          %v1806 = vlaneseq
          %v1807 = vshrl.u32 %v1806, 7
          %v1808 = vsub.s32 0, %v1807
          %v1809 = vrot.slane %v1804, %v1808
          %v1815 = vunpack.c.l.b16 %v1800
          %v1816 = vunpack.c.l.b16 %v1801
          %v1817 = vunpack.c.l.b16 %v1802
          %v1818 = vunpack.c.l.b16 %v1803
          %v1819 = vpack.c.b16 %v1816, %v1815
          %v1820 = vpack.c.b16 %v1818, %v1817
          %v1824 = vsel %vm924, %v1799, 0
          %1826 = vmatprep.subr.bf16.mxu0 0
          %1827 = vmatpush1.bf16.msra.mxu0 0
          %1828 = vmatprep.subr.bf16.mxu0 0
          %1829 = vmatpush1.bf16.msra.mxu0 0
          %1830 = vmatprep.subr.bf16.mxu0 0
          %1831 = vmatpush1.bf16.msra.mxu0 0
          %1832 = vmatprep.subr.bf16.mxu0 0
          %1833 = vmatpush1.bf16.msra.mxu0 0
          %1834 = vmatprep.subr.bf16.mxu0 0
          %1835 = vmatpush1.bf16.msra.mxu0 0
          %1836 = vmatprep.subr.bf16.mxu0 0
          %1837 = vmatpush1.bf16.msra.mxu0 0
          %1838 = vmatprep.subr.bf16.mxu0 0
          %1839 = vmatpush1.bf16.msra.mxu0 %v1820
          %1840 = vmatprep.subr.bf16.mxu0 0
          %1841 = vmatpush1.bf16.msra.mxu0 %v1819
          %1842 = vmatprep.subr.bf16.mxu0 0
          %1843 = vmatpush2.bf16.msra.mxu0 0
          %1844 = vmatprep.subr.bf16.mxu0 0
          %1845 = vmatpush2.bf16.msra.mxu0 0
          %1846 = vmatprep.subr.bf16.mxu0 0
          %1847 = vmatpush2.bf16.msra.mxu0 0
          %1848 = vmatprep.subr.bf16.mxu0 0
          %1849 = vmatpush2.bf16.msra.mxu0 0
          %1850 = vmatprep.subr.bf16.mxu0 0
          %1851 = vmatpush2.bf16.msra.mxu0 0
          %1852 = vmatprep.subr.bf16.mxu0 0
          %1853 = vmatpush2.bf16.msra.mxu0 0
          %1854 = vmatprep.subr.bf16.mxu0 0
          %1855 = vmatpush2.bf16.msra.mxu0 0
          %1856 = vmatprep.subr.bf16.mxu0 0
          %1857 = vmatpush2.bf16.msra.mxu0 0
          %1858 = vmatprep.mubr.bf16.mxu0 0
          %1859 = vmatmul.mubr.bf16.gmra.mxu0 %v1824
          %v1860 = vpop.f32.mrf.mxu0
          %v1861 = vadd.f32 %v1809, %v1860
          %v1862 = vpop.f32.mrf.mxu0
          %v1863 = vpop.f32.mrf.mxu0
          %v1864 = vpop.f32.mrf.mxu0
          %1865 = vdwg.mxu0
          %1866 = vst.msk [vmem:[%s885] sm:$0xff] %vm924, %v1861
        $region152: #{tpu_custom_call.1} parent=95 // pred_fallthru
          _
        %s1867 = sand.u32 %s513, 1
        %s1868 = scalar_lea.sflag [#allocation5], %s1867
        %s1869 = sand.u32 %s513, 1
        %s1870 = smul.addr %s1869, 8
        %s1871 = scalar_lea.vmem [#allocation23], %s1870
        // Predicated region
        $region153: #{tpu_custom_call.1} parent=95 // pred_check
          %p1872 = pneg %p523
        $region154: #{tpu_custom_call.1} parent=95 // pred_check_branch
          %1874 = sbr.rel (%p1872) target = $region156
        $region155: #{tpu_custom_call.1} parent=95 // pred_region
          %s1876 = ssub.s32 128, 128
          %1877 = vsyncadd %s1868, %s1876
          %s1878 = smul.addr %s48, 128
          %s1879 = scalar_lea.hbm %s19, %s1878
          %s1881 = sshll.u32 %s1871, 4
          %s1882 = int_to_ptr.vmem [resolvable:$true] %s1881
          %1884 = dma.vmem_to_hbm [thread:$0]  %s1882, 128, %s1879, %s1868
        $region156: #{tpu_custom_call.1} parent=95 // pred_fallthru
          _
      $region96: #{tpu_custom_call.1} parent=5 // pred_fallthru
        _
      %p1885 = scmp.le.s32.totalorder 2, %s39
      // Predicated region
      $region157: #{tpu_custom_call.1} parent=5 // pred_check
        %p1886 = pneg %p1885
      $region158: #{tpu_custom_call.1} parent=5 // pred_check_branch
        %1888 = sbr.rel (%p1886) target = $region160
      $region159: #{tpu_custom_call.1} parent=5 // pred_region
        %s1889 = ssub.s32 %s39, 2
        // Predicated region
        $region161: #{tpu_custom_call.1} parent=159 // pred_check
          %p1890 = pneg %p529
        $region162: #{tpu_custom_call.1} parent=159 // pred_check_branch
          %1892 = sbr.rel (%p1890) target = $region164
        $region163: #{tpu_custom_call.1} parent=159 // pred_region
          %s1893 = sand.u32 %s514, 1
          %s1894 = scalar_lea.sflag [#allocation5], %s1893
          %s1895 = sand.u32 %s514, 1
          %s1896 = smul.addr %s1895, 8
          %s1897 = scalar_lea.vmem [#allocation23], %s1896
          %1898 = dma.done %s1894, 128
        $region164: #{tpu_custom_call.1} parent=159 // pred_fallthru
          _
      $region160: #{tpu_custom_call.1} parent=5 // pred_fallthru
        _
    $region6: #{tpu_custom_call.1} parent=1 // loop_footer
      %s43 = sadd.s32 1, %s39
    $region7: #{tpu_custom_call.1} parent=1 // loop_footer_branch
      %38 = sbr.rel target = $region3
    $region8: #{tpu_custom_call.1} parent=1 // loop_exit
      _
    %1899 = vsyncpa [#allocation4], 1
    %s1900 = scalar_lea.sflag [#allocation4], 1
    %1901 = vsyncpa %s1900, 1
    %1902 = vsyncpa [#allocation7], 1
    %s1903 = scalar_lea.sflag [#allocation7], 1
    %1904 = vsyncpa %s1903, 1
    %1905 = vsyncpa [#allocation10], 1
    %1906 = vsyncpa [#allocation13], 1
    %1907 = vsyncpa [#allocation16], 1
    %1908 = vsyncpa [#allocation19], 1
    %1909 = vsyncpa [#allocation22], 1
    %1910 = vsyncpa [#allocation5], 1
    %s1911 = scalar_lea.sflag [#allocation5], 1
    %1912 = vsyncpa %s1911, 1

</llo_original>
